<compile_context>
chip_gen: v7x
topology: tpu7x:2x2x1
jax: 0.10.0
libtpu: 0.0.40
codegen_flags: <defaults>
</compile_context>

<pallas_src>
import math

import jax
import jax.numpy as jnp
from jax import lax
from jax.experimental import pallas as pl
from jax.experimental.pallas import tpu as pltpu

BN_EPS = 1e-5


def fused_vessel_kernel(x_ref,        # (T, BT, I)  f32, time-major
                        wih_ref,      # (I, 16H)    bf16  [fwd-wide 8H | bwd-wide 8H]
                        bih_ref,      # (1, 16H)    f32
                        whh_ref,      # (2H, 8H)    bf16  block-diag, interleaved gates
                        aw1f_ref,     # (H, 2H)     bf16  (BN1 folded in)
                        aw1b_ref,     # (H, 2H)     bf16
                        ab1_ref,      # (1, 2H)     f32
                        aw2_ref,      # (2H, 1)     bf16
                        ab2_ref,      # (1, 1)      f32
                        dwihf_ref,    # (H, 4H)     bf16  (BN1 folded in)
                        dwihb_ref,    # (H, 4H)     bf16
                        db_ref,       # (1, 4H)     f32
                        dwhh_ref,     # (H, 4H)     bf16
                        wo_ref,       # (H, I)      bf16  (BN2 folded in)
                        bo_ref,       # (1, I)      f32
                        pred_ref,     # (BT, S, I)  f32  -- final layout
                        attn_ref):    # (T, BT)     f32
    T, B, I = x_ref.shape
    H2, H8 = whh_ref.shape            # (2H, 8H)
    H = H2 // 2
    H4 = 4 * H
    S = pred_ref.shape[1]
    f32 = jnp.float32
    bf16 = jnp.bfloat16

    # ---- hoisted input projection: ONE (T*B, I) @ (I, 16H) matmul feeds both
    #      directions, already laid out in the fused interleaved-gate columns.
    x2 = x_ref[...].reshape(T * B, I).astype(bf16)
    proj = (jnp.dot(x2, wih_ref[...], preferred_element_type=f32)
            + bih_ref[...]).reshape(T, B, 2 * H8)

    whh = whh_ref[...]
    # gate column layout per 2H block: [i | f | o | g]; tanh lives at [6H, 8H).
    is_g_enc = lax.broadcasted_iota(jnp.int32, (B, H8), 1) >= 6 * H   # hoisted
    is_g_dec = lax.broadcasted_iota(jnp.int32, (B, H4), 1) >= 3 * H   # hoisted

    # ---- fused fwd/bwd recurrence: one 256-lane matmul + joint cell update ----
    zero_cat = jnp.zeros((B, H2), f32)
    h_cat, c_cat = zero_cat, zero_cat
    hs_f = [None] * T
    hs_b = [None] * T
    for k in range(T):
        tb = T - 1 - k
        # fwd gates from time k, bwd gates from time T-1-k; they occupy disjoint
        # interleaved lane positions in the two 8H halves of `proj`, so fusing
        # them is a single VPU add.
        xg = proj[k, :, :H8] + proj[tb, :, H8:]
        if k == 0:
            gates = xg
        else:
            gates = xg + jnp.dot(h_cat.astype(bf16), whh,
                                 preferred_element_type=f32)
        act = jnp.where(is_g_enc, jnp.tanh(gates), jax.nn.sigmoid(gates))
        i_cat = act[:, 0 * H2:1 * H2]
        f_cat = act[:, 1 * H2:2 * H2]
        o_cat = act[:, 2 * H2:3 * H2]
        g_cat = act[:, 3 * H2:4 * H2]
        c_cat = f_cat * c_cat + i_cat * g_cat
        h_cat = o_cat * jnp.tanh(c_cat)
        hs_f[k] = h_cat[:, :H]
        hs_b[tb] = h_cat[:, H:]

    # Keep fwd / bwd encoder outputs separate (never build the (T,B,2H) concat);
    # every consumer below is split into fwd + bwd halves.
    enc_f = jnp.stack(hs_f, axis=0)           # (T, B, H)
    enc_b = jnp.stack(hs_b, axis=0)           # (T, B, H)

    # ---- attention (encoder_norm already folded into aw1 / decoder weights) ----
    ef2 = enc_f.reshape(T * B, H).astype(bf16)
    eb2 = enc_b.reshape(T * B, H).astype(bf16)
    h1 = jnp.tanh(jnp.dot(ef2, aw1f_ref[...], preferred_element_type=f32)
                  + jnp.dot(eb2, aw1b_ref[...], preferred_element_type=f32)
                  + ab1_ref[...])                                   # (T*B, 2H)
    scores = (jnp.dot(h1.astype(bf16), aw2_ref[...],
                      preferred_element_type=f32)
              + ab2_ref[...]).reshape(T, B, 1)                      # (T, B, 1)

    m = jnp.max(scores, axis=0, keepdims=True)
    e = jnp.exp(scores - m)
    attn = e / jnp.sum(e, axis=0, keepdims=True)                    # (T, B, 1)
    attn_ref[...] = attn.reshape(T, B)

    ctx_f = jnp.sum(attn * enc_f, axis=0)                           # (B, H)
    ctx_b = jnp.sum(attn * enc_b, axis=0)                           # (B, H)

    # ---- decoder LSTM (constant input = context), unrolled over S ----
    xg_d = (jnp.dot(ctx_f.astype(bf16), dwihf_ref[...], preferred_element_type=f32)
            + jnp.dot(ctx_b.astype(bf16), dwihb_ref[...], preferred_element_type=f32)
            + db_ref[...])                                          # (B, 4H)
    dwhh = dwhh_ref[...]
    wo = wo_ref[...]
    bo = bo_ref[...]

    h_d = jnp.zeros((B, H), f32)
    c_d = jnp.zeros((B, H), f32)
    preds = []
    for s in range(S):
        if s == 0:
            g = xg_d
        else:
            g = xg_d + jnp.dot(h_d.astype(bf16), dwhh,
                               preferred_element_type=f32)
        act = jnp.where(is_g_dec, jnp.tanh(g), jax.nn.sigmoid(g))
        i_d = act[:, :H]
        f_d = act[:, H:2 * H]
        o_d = act[:, 2 * H:3 * H]
        g_d = act[:, 3 * H:]
        c_d = f_d * c_d + i_d * g_d
        h_d = o_d * jnp.tanh(c_d)
        # decoder_norm is folded into wo/bo; output Linear goes straight out.
        preds.append(jnp.dot(h_d.astype(bf16), wo,
                             preferred_element_type=f32) + bo)      # (B, I)
    pred_ref[...] = jnp.stack(preds, axis=1)                        # (B, S, I)


def _full_spec(a):
    nd = a.ndim
    return pl.BlockSpec(a.shape, lambda b, _nd=nd: (0,) * _nd)


def vessel_trajectory_predictor_forward(x, kp, output_seq_len=1):
    """x: (B, T, input_size) float32.  Returns (predictions, attention_weights)."""
    B, T, I = x.shape
    S = output_seq_len

    # Pad batch to a sublane multiple and pick a batch tile (single tile at
    # test shapes; at production sizes this bounds per-tile VMEM on v7x and
    # shards tiles across its two TensorCores).
    B_pad = max(8, -(-B // 8) * 8)
    BT = min(B_pad, 128)
    B_pad = -(-B_pad // BT) * BT
    x32 = x.astype(jnp.float32)
    if B_pad != B:
        x32 = jnp.pad(x32, ((0, B_pad - B), (0, 0), (0, 0)))
    x_tm = jnp.transpose(x32, (1, 0, 2))                            # (T, B_pad, I)

    weights = (kp["wih"], kp["bih"], kp["whh"],
               kp["aw1_f"], kp["aw1_b"], kp["ab1"], kp["aw2_t"], kp["ab2"],
               kp["dwih_f"], kp["dwih_b"], kp["db"], kp["dwhh"],
               kp["wo"], kp["bo"])

    in_specs = ([pl.BlockSpec((T, BT, I), lambda b: (0, b, 0))]
                + [_full_spec(w) for w in weights])
    out_specs = (pl.BlockSpec((BT, S, I), lambda b: (b, 0, 0)),
                 pl.BlockSpec((T, BT), lambda b: (0, b)))

    pred, attn_tb = pl.pallas_call(
        fused_vessel_kernel,
        out_shape=(jax.ShapeDtypeStruct((B_pad, S, I), jnp.float32),
                   jax.ShapeDtypeStruct((T, B_pad), jnp.float32)),
        grid=(B_pad // BT,),
        in_specs=in_specs,
        out_specs=out_specs,
        compiler_params=pltpu.CompilerParams(
            dimension_semantics=("parallel",),
            vmem_limit_bytes=32 * 1024 * 1024),
    )(x_tm, *weights)

    predictions = pred[:B]                                          # (B, S, I)
    attention_weights = jnp.transpose(attn_tb, (1, 0))[:B, :, None] # (B, T, 1)
    return predictions, attention_weights


def init_params(key, input_size, hidden_size):
    """Deterministic synthetic parameters (torch-like, but pre-transposed to
    (in_features, 4H) with gate column order (i, f, o, g); loading real PyTorch
    checkpoints would need a transpose + gate permutation + b_ih+b_hh sum)."""
    H, I = hidden_size, input_size
    D = 2 * H
    k = 1.0 / math.sqrt(H)
    keys = iter(jax.random.split(key, 24))

    def u(shape):
        return jax.random.uniform(next(keys), shape, jnp.float32, -k, k)

    p = {}
    p["enc_f_wih"] = u((I, 4 * H)); p["enc_f_whh"] = u((H, 4 * H))
    p["enc_f_b"] = u((1, 4 * H)) + u((1, 4 * H))
    p["enc_b_wih"] = u((I, 4 * H)); p["enc_b_whh"] = u((H, 4 * H))
    p["enc_b_b"] = u((1, 4 * H)) + u((1, 4 * H))
    p["attn_w1"] = u((D, D)); p["attn_b1"] = u((1, D))
    p["attn_w2"] = u((1, D)); p["attn_b2"] = u((1, 1))
    p["dec_wih"] = u((D, 4 * H)); p["dec_whh"] = u((H, 4 * H))
    p["dec_b"] = u((1, 4 * H)) + u((1, 4 * H))
    p["out_w"] = u((H, I)); p["out_b"] = u((1, I))
    # BatchNorm1d (PyTorch default init + fresh running stats, eval mode)
    p["bn1_g"] = jnp.ones((1, D), jnp.float32); p["bn1_b"] = jnp.zeros((1, D), jnp.float32)
    p["bn1_m"] = jnp.zeros((1, D), jnp.float32); p["bn1_v"] = jnp.ones((1, D), jnp.float32)
    p["bn2_g"] = jnp.ones((1, H), jnp.float32); p["bn2_b"] = jnp.zeros((1, H), jnp.float32)
    p["bn2_m"] = jnp.zeros((1, H), jnp.float32); p["bn2_v"] = jnp.ones((1, H), jnp.float32)
    return p


def prepare_kernel_params(p, input_size, hidden_size):
    """Fold eval-mode BatchNorms into adjacent linears, build the fused
    interleaved-gate encoder layouts, cast matmul weights to bf16."""
    H, I = hidden_size, input_size
    D = 2 * H
    bf16 = jnp.bfloat16
    f32 = jnp.float32

    # Interleaved-gate fused columns: for gate g in (i,f,o,g) the fwd block sits
    # at [2H*g, 2H*g+H) and the bwd block at [2H*g+H, 2H*(g+1)).
    wih_f4 = p["enc_f_wih"].reshape(I, 4, H)
    wih_b4 = p["enc_b_wih"].reshape(I, 4, H)
    zI = jnp.zeros((I, H), f32)
    fwd_wide = jnp.concatenate(
        [jnp.concatenate([wih_f4[:, g], zI], axis=1) for g in range(4)], axis=1)
    bwd_wide = jnp.concatenate(
        [jnp.concatenate([zI, wih_b4[:, g]], axis=1) for g in range(4)], axis=1)
    wih = jnp.concatenate([fwd_wide, bwd_wide], axis=1)              # (I, 16H)

    bf4 = p["enc_f_b"].reshape(1, 4, H)
    bb4 = p["enc_b_b"].reshape(1, 4, H)
    z1 = jnp.zeros((1, H), f32)
    bih = jnp.concatenate(
        [jnp.concatenate([jnp.concatenate([bf4[:, g], z1], axis=1) for g in range(4)], axis=1),
         jnp.concatenate([jnp.concatenate([z1, bb4[:, g]], axis=1) for g in range(4)], axis=1)],
        axis=1)                                                      # (1, 16H)

    whh_f4 = p["enc_f_whh"].reshape(H, 4, H)
    whh_b4 = p["enc_b_whh"].reshape(H, 4, H)
    zH = jnp.zeros((H, H), f32)
    whh = jnp.concatenate(
        [jnp.concatenate(
            [jnp.concatenate([whh_f4[:, g], zH], axis=1),
             jnp.concatenate([zH, whh_b4[:, g]], axis=1)], axis=0)
         for g in range(4)], axis=1)                                 # (2H, 8H) block-diag

    # encoder_norm (BatchNorm1d(2H), eval) folded into both consumers.
    s1 = p["bn1_g"] * lax.rsqrt(p["bn1_v"] + BN_EPS)                 # (1, 2H)
    t1 = p["bn1_b"] - p["bn1_m"] * s1                                # (1, 2H)
    aw1 = s1.reshape(D, 1) * p["attn_w1"]                            # (2H, 2H)
    ab1 = p["attn_b1"] + jnp.dot(t1, p["attn_w1"])                   # (1, 2H)
    # softmax attention weights sum to 1 over time -> same affine fold is exact
    # for the context -> decoder-input path.
    dwih = s1.reshape(D, 1) * p["dec_wih"]                           # (2H, 4H)
    db = p["dec_b"] + jnp.dot(t1, p["dec_wih"])                      # (1, 4H)

    # decoder_norm (BatchNorm1d(H), eval) folded into the output Linear.
    s2 = p["bn2_g"] * lax.rsqrt(p["bn2_v"] + BN_EPS)                 # (1, H)
    t2 = p["bn2_b"] - p["bn2_m"] * s2                                # (1, H)
    wo = s2.reshape(H, 1) * p["out_w"]                               # (H, I)
    bo = p["out_b"] + jnp.dot(t2, p["out_w"])                        # (1, I)

    return {
        "wih": wih.astype(bf16), "bih": bih,
        "whh": whh.astype(bf16),
        "aw1_f": aw1[:H].astype(bf16), "aw1_b": aw1[H:].astype(bf16), "ab1": ab1,
        "aw2_t": p["attn_w2"].reshape(D, 1).astype(bf16), "ab2": p["attn_b2"],
        "dwih_f": dwih[:H].astype(bf16), "dwih_b": dwih[H:].astype(bf16),
        "db": db, "dwhh": p["dec_whh"].astype(bf16),
        "wo": wo.astype(bf16), "bo": bo,
    }


if __name__ == "__main__":
    B, T = 2, 8
    INPUT_SIZE, HIDDEN_SIZE, OUTPUT_SEQ_LEN = 2, 32, 1

    key = jax.random.PRNGKey(0)
    k_x, k_p = jax.random.split(key)
    x = jax.random.normal(k_x, (B, T, INPUT_SIZE), jnp.float32)
    raw = init_params(k_p, INPUT_SIZE, HIDDEN_SIZE)
    kparams = prepare_kernel_params(raw, INPUT_SIZE, HIDDEN_SIZE)

    fwd = jax.jit(lambda xx: vessel_trajectory_predictor_forward(
        xx, kparams, OUTPUT_SEQ_LEN))
    preds, attn = fwd(x)
    preds = jax.block_until_ready(preds)
    attn = jax.block_until_ready(attn)

    assert preds.shape == (B, OUTPUT_SEQ_LEN, INPUT_SIZE), preds.shape
    assert attn.shape == (B, T, 1), attn.shape
    assert bool(jnp.all(jnp.isfinite(preds))) and bool(jnp.all(jnp.isfinite(attn)))
    # attention weights must sum to 1 over the time axis
    assert bool(jnp.allclose(jnp.sum(attn, axis=1), 1.0, atol=1e-5))
    print("KERNEL_OK")
</pallas_src>

<mosaic_0001>
module attributes {stable_mosaic.version = 11 : i64} {
  func.func @fused_vessel_kernel(%arg0: i32, %arg1: memref<8x8x2xf32, #tpu.memory_space<vmem>>, %arg2: memref<2x512xbf16, #tpu.memory_space<vmem>>, %arg3: memref<1x512xf32, #tpu.memory_space<vmem>>, %arg4: memref<64x256xbf16, #tpu.memory_space<vmem>>, %arg5: memref<32x64xbf16, #tpu.memory_space<vmem>>, %arg6: memref<32x64xbf16, #tpu.memory_space<vmem>>, %arg7: memref<1x64xf32, #tpu.memory_space<vmem>>, %arg8: memref<64x1xbf16, #tpu.memory_space<vmem>>, %arg9: memref<1x1xf32, #tpu.memory_space<vmem>>, %arg10: memref<32x128xbf16, #tpu.memory_space<vmem>>, %arg11: memref<32x128xbf16, #tpu.memory_space<vmem>>, %arg12: memref<1x128xf32, #tpu.memory_space<vmem>>, %arg13: memref<32x128xbf16, #tpu.memory_space<vmem>>, %arg14: memref<32x2xbf16, #tpu.memory_space<vmem>>, %arg15: memref<1x2xf32, #tpu.memory_space<vmem>>, %arg16: memref<8x1x2xf32, #tpu.memory_space<vmem>>, %arg17: memref<8x8xf32, #tpu.memory_space<vmem>>) attributes {dimension_semantics = [#tpu.dimension_semantics<parallel>], iteration_bounds = array<i64: 1>, scalar_prefetch = 0 : i64, scratch_operands = 0 : i64, tpu.core_type = #tpu.core_type<tc>, window_params = [{transform_indices = @transform_0, window_bounds = array<i64: 8, 8, 2>}, {pipeline_mode = #tpu.pipeline_mode<synchronous>, transform_indices = @transform_1, window_bounds = array<i64: 2, 512>}, {pipeline_mode = #tpu.pipeline_mode<synchronous>, transform_indices = @transform_2, window_bounds = array<i64: 1, 512>}, {pipeline_mode = #tpu.pipeline_mode<synchronous>, transform_indices = @transform_3, window_bounds = array<i64: 64, 256>}, {pipeline_mode = #tpu.pipeline_mode<synchronous>, transform_indices = @transform_4, window_bounds = array<i64: 32, 64>}, {pipeline_mode = #tpu.pipeline_mode<synchronous>, transform_indices = @transform_5, window_bounds = array<i64: 32, 64>}, {pipeline_mode = #tpu.pipeline_mode<synchronous>, transform_indices = @transform_6, window_bounds = array<i64: 1, 64>}, {pipeline_mode = #tpu.pipeline_mode<synchronous>, transform_indices = @transform_7, window_bounds = array<i64: 64, 1>}, {pipeline_mode = #tpu.pipeline_mode<synchronous>, transform_indices = @transform_8, window_bounds = array<i64: 1, 1>}, {pipeline_mode = #tpu.pipeline_mode<synchronous>, transform_indices = @transform_9, window_bounds = array<i64: 32, 128>}, {pipeline_mode = #tpu.pipeline_mode<synchronous>, transform_indices = @transform_10, window_bounds = array<i64: 32, 128>}, {pipeline_mode = #tpu.pipeline_mode<synchronous>, transform_indices = @transform_11, window_bounds = array<i64: 1, 128>}, {pipeline_mode = #tpu.pipeline_mode<synchronous>, transform_indices = @transform_12, window_bounds = array<i64: 32, 128>}, {pipeline_mode = #tpu.pipeline_mode<synchronous>, transform_indices = @transform_13, window_bounds = array<i64: 32, 2>}, {pipeline_mode = #tpu.pipeline_mode<synchronous>, transform_indices = @transform_14, window_bounds = array<i64: 1, 2>}, {transform_indices = @transform_15, window_bounds = array<i64: 8, 1, 2>}, {transform_indices = @transform_16, window_bounds = array<i64: 8, 8>}]} {
    %c0 = arith.constant 0 : index
    %c0_0 = arith.constant 0 : index
    %c0_1 = arith.constant 0 : index
    %0 = vector.load %arg1[%c0, %c0_0, %c0_1] : memref<8x8x2xf32, #tpu.memory_space<vmem>>, vector<8x8x2xf32>
    %1 = vector.shape_cast %0 : vector<8x8x2xf32> to vector<64x2xf32>
    %2 = arith.truncf %1 : vector<64x2xf32> to vector<64x2xbf16>
    %c0_2 = arith.constant 0 : index
    %c0_3 = arith.constant 0 : index
    %3 = vector.load %arg2[%c0_2, %c0_3] : memref<2x512xbf16, #tpu.memory_space<vmem>>, vector<2x512xbf16>
    %cst = arith.constant dense<0.000000e+00> : vector<64x512xf32>
    %4 = tpu.matmul %2, %3, %cst {dimension_numbers = #tpu.dot_dimension_numbers<[1], [0], [0], [1], [0, 0, 1, 1], [], []>} : vector<64x2xbf16>, vector<2x512xbf16>, vector<64x512xf32> -> vector<64x512xf32>
    %c0_4 = arith.constant 0 : index
    %c0_5 = arith.constant 0 : index
    %5 = vector.load %arg3[%c0_4, %c0_5] : memref<1x512xf32, #tpu.memory_space<vmem>>, vector<1x512xf32>
    %6 = vector.broadcast %5 : vector<1x512xf32> to vector<64x512xf32>
    %7 = arith.addf %4, %6 : vector<64x512xf32>
    %8 = vector.shape_cast %7 : vector<64x512xf32> to vector<8x8x512xf32>
    %c0_6 = arith.constant 0 : index
    %c0_7 = arith.constant 0 : index
    %9 = vector.load %arg4[%c0_6, %c0_7] : memref<64x256xbf16, #tpu.memory_space<vmem>>, vector<64x256xbf16>
    %10 = tpu.iota {dimensions = array<i32: 1>} : vector<8x256xi32>
    %c192_i32 = arith.constant 192 : i32
    %11 = vector.broadcast %c192_i32 : i32 to vector<8x256xi32>
    %12 = arith.cmpi sge, %10, %11 : vector<8x256xi32>
    %13 = tpu.iota {dimensions = array<i32: 1>} : vector<8x128xi32>
    %c96_i32 = arith.constant 96 : i32
    %14 = vector.broadcast %c96_i32 : i32 to vector<8x128xi32>
    %15 = arith.cmpi sge, %13, %14 : vector<8x128xi32>
    %cst_8 = arith.constant 0.000000e+00 : f32
    %16 = vector.broadcast %cst_8 : f32 to vector<8x64xf32>
    %17 = vector.extract_strided_slice %8 {offsets = [0, 0, 0], sizes = [1, 8, 256], strides = [1, 1, 1]} : vector<8x8x512xf32> to vector<1x8x256xf32>
    %18 = vector.shape_cast %17 : vector<1x8x256xf32> to vector<8x256xf32>
    %19 = vector.extract_strided_slice %8 {offsets = [7, 0, 256], sizes = [1, 8, 256], strides = [1, 1, 1]} : vector<8x8x512xf32> to vector<1x8x256xf32>
    %20 = vector.shape_cast %19 : vector<1x8x256xf32> to vector<8x256xf32>
    %21 = arith.addf %18, %20 : vector<8x256xf32>
    %22 = math.tanh %21 : vector<8x256xf32>
    %23 = arith.negf %21 : vector<8x256xf32>
    %24 = math.exp %23 : vector<8x256xf32>
    %cst_9 = arith.constant 1.000000e+00 : f32
    %25 = vector.broadcast %cst_9 : f32 to vector<8x256xf32>
    %26 = arith.addf %25, %24 : vector<8x256xf32>
    %27 = arith.divf %25, %26 : vector<8x256xf32>
    %28 = arith.select %12, %22, %27 : vector<8x256xi1>, vector<8x256xf32>
    %29 = vector.extract_strided_slice %28 {offsets = [0, 0], sizes = [8, 64], strides = [1, 1]} : vector<8x256xf32> to vector<8x64xf32>
    %30 = vector.extract_strided_slice %28 {offsets = [0, 64], sizes = [8, 64], strides = [1, 1]} : vector<8x256xf32> to vector<8x64xf32>
    %31 = vector.extract_strided_slice %28 {offsets = [0, 128], sizes = [8, 64], strides = [1, 1]} : vector<8x256xf32> to vector<8x64xf32>
    %32 = vector.extract_strided_slice %28 {offsets = [0, 192], sizes = [8, 64], strides = [1, 1]} : vector<8x256xf32> to vector<8x64xf32>
    %33 = arith.mulf %30, %16 : vector<8x64xf32>
    %34 = arith.mulf %29, %32 : vector<8x64xf32>
    %35 = arith.addf %33, %34 : vector<8x64xf32>
    %36 = math.tanh %35 : vector<8x64xf32>
    %37 = arith.mulf %31, %36 : vector<8x64xf32>
    %38 = vector.extract_strided_slice %37 {offsets = [0, 0], sizes = [8, 32], strides = [1, 1]} : vector<8x64xf32> to vector<8x32xf32>
    %39 = vector.extract_strided_slice %37 {offsets = [0, 32], sizes = [8, 32], strides = [1, 1]} : vector<8x64xf32> to vector<8x32xf32>
    %40 = vector.extract_strided_slice %8 {offsets = [1, 0, 0], sizes = [1, 8, 256], strides = [1, 1, 1]} : vector<8x8x512xf32> to vector<1x8x256xf32>
    %41 = vector.shape_cast %40 : vector<1x8x256xf32> to vector<8x256xf32>
    %42 = vector.extract_strided_slice %8 {offsets = [6, 0, 256], sizes = [1, 8, 256], strides = [1, 1, 1]} : vector<8x8x512xf32> to vector<1x8x256xf32>
    %43 = vector.shape_cast %42 : vector<1x8x256xf32> to vector<8x256xf32>
    %44 = arith.addf %41, %43 : vector<8x256xf32>
    %45 = arith.truncf %37 : vector<8x64xf32> to vector<8x64xbf16>
    %cst_10 = arith.constant dense<0.000000e+00> : vector<8x256xf32>
    %46 = tpu.matmul %45, %9, %cst_10 {dimension_numbers = #tpu.dot_dimension_numbers<[1], [0], [0], [1], [0, 0, 1, 1], [], []>} : vector<8x64xbf16>, vector<64x256xbf16>, vector<8x256xf32> -> vector<8x256xf32>
    %47 = arith.addf %44, %46 : vector<8x256xf32>
    %48 = math.tanh %47 : vector<8x256xf32>
    %49 = arith.negf %47 : vector<8x256xf32>
    %50 = math.exp %49 : vector<8x256xf32>
    %cst_11 = arith.constant 1.000000e+00 : f32
    %51 = vector.broadcast %cst_11 : f32 to vector<8x256xf32>
    %52 = arith.addf %51, %50 : vector<8x256xf32>
    %53 = arith.divf %51, %52 : vector<8x256xf32>
    %54 = arith.select %12, %48, %53 : vector<8x256xi1>, vector<8x256xf32>
    %55 = vector.extract_strided_slice %54 {offsets = [0, 0], sizes = [8, 64], strides = [1, 1]} : vector<8x256xf32> to vector<8x64xf32>
    %56 = vector.extract_strided_slice %54 {offsets = [0, 64], sizes = [8, 64], strides = [1, 1]} : vector<8x256xf32> to vector<8x64xf32>
    %57 = vector.extract_strided_slice %54 {offsets = [0, 128], sizes = [8, 64], strides = [1, 1]} : vector<8x256xf32> to vector<8x64xf32>
    %58 = vector.extract_strided_slice %54 {offsets = [0, 192], sizes = [8, 64], strides = [1, 1]} : vector<8x256xf32> to vector<8x64xf32>
    %59 = arith.mulf %56, %35 : vector<8x64xf32>
    %60 = arith.mulf %55, %58 : vector<8x64xf32>
    %61 = arith.addf %59, %60 : vector<8x64xf32>
    %62 = math.tanh %61 : vector<8x64xf32>
    %63 = arith.mulf %57, %62 : vector<8x64xf32>
    %64 = vector.extract_strided_slice %63 {offsets = [0, 0], sizes = [8, 32], strides = [1, 1]} : vector<8x64xf32> to vector<8x32xf32>
    %65 = vector.extract_strided_slice %63 {offsets = [0, 32], sizes = [8, 32], strides = [1, 1]} : vector<8x64xf32> to vector<8x32xf32>
    %66 = vector.extract_strided_slice %8 {offsets = [2, 0, 0], sizes = [1, 8, 256], strides = [1, 1, 1]} : vector<8x8x512xf32> to vector<1x8x256xf32>
    %67 = vector.shape_cast %66 : vector<1x8x256xf32> to vector<8x256xf32>
    %68 = vector.extract_strided_slice %8 {offsets = [5, 0, 256], sizes = [1, 8, 256], strides = [1, 1, 1]} : vector<8x8x512xf32> to vector<1x8x256xf32>
    %69 = vector.shape_cast %68 : vector<1x8x256xf32> to vector<8x256xf32>
    %70 = arith.addf %67, %69 : vector<8x256xf32>
    %71 = arith.truncf %63 : vector<8x64xf32> to vector<8x64xbf16>
    %cst_12 = arith.constant dense<0.000000e+00> : vector<8x256xf32>
    %72 = tpu.matmul %71, %9, %cst_12 {dimension_numbers = #tpu.dot_dimension_numbers<[1], [0], [0], [1], [0, 0, 1, 1], [], []>} : vector<8x64xbf16>, vector<64x256xbf16>, vector<8x256xf32> -> vector<8x256xf32>
    %73 = arith.addf %70, %72 : vector<8x256xf32>
    %74 = math.tanh %73 : vector<8x256xf32>
    %75 = arith.negf %73 : vector<8x256xf32>
    %76 = math.exp %75 : vector<8x256xf32>
    %cst_13 = arith.constant 1.000000e+00 : f32
    %77 = vector.broadcast %cst_13 : f32 to vector<8x256xf32>
    %78 = arith.addf %77, %76 : vector<8x256xf32>
    %79 = arith.divf %77, %78 : vector<8x256xf32>
    %80 = arith.select %12, %74, %79 : vector<8x256xi1>, vector<8x256xf32>
    %81 = vector.extract_strided_slice %80 {offsets = [0, 0], sizes = [8, 64], strides = [1, 1]} : vector<8x256xf32> to vector<8x64xf32>
    %82 = vector.extract_strided_slice %80 {offsets = [0, 64], sizes = [8, 64], strides = [1, 1]} : vector<8x256xf32> to vector<8x64xf32>
    %83 = vector.extract_strided_slice %80 {offsets = [0, 128], sizes = [8, 64], strides = [1, 1]} : vector<8x256xf32> to vector<8x64xf32>
    %84 = vector.extract_strided_slice %80 {offsets = [0, 192], sizes = [8, 64], strides = [1, 1]} : vector<8x256xf32> to vector<8x64xf32>
    %85 = arith.mulf %82, %61 : vector<8x64xf32>
    %86 = arith.mulf %81, %84 : vector<8x64xf32>
    %87 = arith.addf %85, %86 : vector<8x64xf32>
    %88 = math.tanh %87 : vector<8x64xf32>
    %89 = arith.mulf %83, %88 : vector<8x64xf32>
    %90 = vector.extract_strided_slice %89 {offsets = [0, 0], sizes = [8, 32], strides = [1, 1]} : vector<8x64xf32> to vector<8x32xf32>
    %91 = vector.extract_strided_slice %89 {offsets = [0, 32], sizes = [8, 32], strides = [1, 1]} : vector<8x64xf32> to vector<8x32xf32>
    %92 = vector.extract_strided_slice %8 {offsets = [3, 0, 0], sizes = [1, 8, 256], strides = [1, 1, 1]} : vector<8x8x512xf32> to vector<1x8x256xf32>
    %93 = vector.shape_cast %92 : vector<1x8x256xf32> to vector<8x256xf32>
    %94 = vector.extract_strided_slice %8 {offsets = [4, 0, 256], sizes = [1, 8, 256], strides = [1, 1, 1]} : vector<8x8x512xf32> to vector<1x8x256xf32>
    %95 = vector.shape_cast %94 : vector<1x8x256xf32> to vector<8x256xf32>
    %96 = arith.addf %93, %95 : vector<8x256xf32>
    %97 = arith.truncf %89 : vector<8x64xf32> to vector<8x64xbf16>
    %cst_14 = arith.constant dense<0.000000e+00> : vector<8x256xf32>
    %98 = tpu.matmul %97, %9, %cst_14 {dimension_numbers = #tpu.dot_dimension_numbers<[1], [0], [0], [1], [0, 0, 1, 1], [], []>} : vector<8x64xbf16>, vector<64x256xbf16>, vector<8x256xf32> -> vector<8x256xf32>
    %99 = arith.addf %96, %98 : vector<8x256xf32>
    %100 = math.tanh %99 : vector<8x256xf32>
    %101 = arith.negf %99 : vector<8x256xf32>
    %102 = math.exp %101 : vector<8x256xf32>
    %cst_15 = arith.constant 1.000000e+00 : f32
    %103 = vector.broadcast %cst_15 : f32 to vector<8x256xf32>
    %104 = arith.addf %103, %102 : vector<8x256xf32>
    %105 = arith.divf %103, %104 : vector<8x256xf32>
    %106 = arith.select %12, %100, %105 : vector<8x256xi1>, vector<8x256xf32>
    %107 = vector.extract_strided_slice %106 {offsets = [0, 0], sizes = [8, 64], strides = [1, 1]} : vector<8x256xf32> to vector<8x64xf32>
    %108 = vector.extract_strided_slice %106 {offsets = [0, 64], sizes = [8, 64], strides = [1, 1]} : vector<8x256xf32> to vector<8x64xf32>
    %109 = vector.extract_strided_slice %106 {offsets = [0, 128], sizes = [8, 64], strides = [1, 1]} : vector<8x256xf32> to vector<8x64xf32>
    %110 = vector.extract_strided_slice %106 {offsets = [0, 192], sizes = [8, 64], strides = [1, 1]} : vector<8x256xf32> to vector<8x64xf32>
    %111 = arith.mulf %108, %87 : vector<8x64xf32>
    %112 = arith.mulf %107, %110 : vector<8x64xf32>
    %113 = arith.addf %111, %112 : vector<8x64xf32>
    %114 = math.tanh %113 : vector<8x64xf32>
    %115 = arith.mulf %109, %114 : vector<8x64xf32>
    %116 = vector.extract_strided_slice %115 {offsets = [0, 0], sizes = [8, 32], strides = [1, 1]} : vector<8x64xf32> to vector<8x32xf32>
    %117 = vector.extract_strided_slice %115 {offsets = [0, 32], sizes = [8, 32], strides = [1, 1]} : vector<8x64xf32> to vector<8x32xf32>
    %118 = vector.extract_strided_slice %8 {offsets = [4, 0, 0], sizes = [1, 8, 256], strides = [1, 1, 1]} : vector<8x8x512xf32> to vector<1x8x256xf32>
    %119 = vector.shape_cast %118 : vector<1x8x256xf32> to vector<8x256xf32>
    %120 = vector.extract_strided_slice %8 {offsets = [3, 0, 256], sizes = [1, 8, 256], strides = [1, 1, 1]} : vector<8x8x512xf32> to vector<1x8x256xf32>
    %121 = vector.shape_cast %120 : vector<1x8x256xf32> to vector<8x256xf32>
    %122 = arith.addf %119, %121 : vector<8x256xf32>
    %123 = arith.truncf %115 : vector<8x64xf32> to vector<8x64xbf16>
    %cst_16 = arith.constant dense<0.000000e+00> : vector<8x256xf32>
    %124 = tpu.matmul %123, %9, %cst_16 {dimension_numbers = #tpu.dot_dimension_numbers<[1], [0], [0], [1], [0, 0, 1, 1], [], []>} : vector<8x64xbf16>, vector<64x256xbf16>, vector<8x256xf32> -> vector<8x256xf32>
    %125 = arith.addf %122, %124 : vector<8x256xf32>
    %126 = math.tanh %125 : vector<8x256xf32>
    %127 = arith.negf %125 : vector<8x256xf32>
    %128 = math.exp %127 : vector<8x256xf32>
    %cst_17 = arith.constant 1.000000e+00 : f32
    %129 = vector.broadcast %cst_17 : f32 to vector<8x256xf32>
    %130 = arith.addf %129, %128 : vector<8x256xf32>
    %131 = arith.divf %129, %130 : vector<8x256xf32>
    %132 = arith.select %12, %126, %131 : vector<8x256xi1>, vector<8x256xf32>
    %133 = vector.extract_strided_slice %132 {offsets = [0, 0], sizes = [8, 64], strides = [1, 1]} : vector<8x256xf32> to vector<8x64xf32>
    %134 = vector.extract_strided_slice %132 {offsets = [0, 64], sizes = [8, 64], strides = [1, 1]} : vector<8x256xf32> to vector<8x64xf32>
    %135 = vector.extract_strided_slice %132 {offsets = [0, 128], sizes = [8, 64], strides = [1, 1]} : vector<8x256xf32> to vector<8x64xf32>
    %136 = vector.extract_strided_slice %132 {offsets = [0, 192], sizes = [8, 64], strides = [1, 1]} : vector<8x256xf32> to vector<8x64xf32>
    %137 = arith.mulf %134, %113 : vector<8x64xf32>
    %138 = arith.mulf %133, %136 : vector<8x64xf32>
    %139 = arith.addf %137, %138 : vector<8x64xf32>
    %140 = math.tanh %139 : vector<8x64xf32>
    %141 = arith.mulf %135, %140 : vector<8x64xf32>
    %142 = vector.extract_strided_slice %141 {offsets = [0, 0], sizes = [8, 32], strides = [1, 1]} : vector<8x64xf32> to vector<8x32xf32>
    %143 = vector.extract_strided_slice %141 {offsets = [0, 32], sizes = [8, 32], strides = [1, 1]} : vector<8x64xf32> to vector<8x32xf32>
    %144 = vector.extract_strided_slice %8 {offsets = [5, 0, 0], sizes = [1, 8, 256], strides = [1, 1, 1]} : vector<8x8x512xf32> to vector<1x8x256xf32>
    %145 = vector.shape_cast %144 : vector<1x8x256xf32> to vector<8x256xf32>
    %146 = vector.extract_strided_slice %8 {offsets = [2, 0, 256], sizes = [1, 8, 256], strides = [1, 1, 1]} : vector<8x8x512xf32> to vector<1x8x256xf32>
    %147 = vector.shape_cast %146 : vector<1x8x256xf32> to vector<8x256xf32>
    %148 = arith.addf %145, %147 : vector<8x256xf32>
    %149 = arith.truncf %141 : vector<8x64xf32> to vector<8x64xbf16>
    %cst_18 = arith.constant dense<0.000000e+00> : vector<8x256xf32>
    %150 = tpu.matmul %149, %9, %cst_18 {dimension_numbers = #tpu.dot_dimension_numbers<[1], [0], [0], [1], [0, 0, 1, 1], [], []>} : vector<8x64xbf16>, vector<64x256xbf16>, vector<8x256xf32> -> vector<8x256xf32>
    %151 = arith.addf %148, %150 : vector<8x256xf32>
    %152 = math.tanh %151 : vector<8x256xf32>
    %153 = arith.negf %151 : vector<8x256xf32>
    %154 = math.exp %153 : vector<8x256xf32>
    %cst_19 = arith.constant 1.000000e+00 : f32
    %155 = vector.broadcast %cst_19 : f32 to vector<8x256xf32>
    %156 = arith.addf %155, %154 : vector<8x256xf32>
    %157 = arith.divf %155, %156 : vector<8x256xf32>
    %158 = arith.select %12, %152, %157 : vector<8x256xi1>, vector<8x256xf32>
    %159 = vector.extract_strided_slice %158 {offsets = [0, 0], sizes = [8, 64], strides = [1, 1]} : vector<8x256xf32> to vector<8x64xf32>
    %160 = vector.extract_strided_slice %158 {offsets = [0, 64], sizes = [8, 64], strides = [1, 1]} : vector<8x256xf32> to vector<8x64xf32>
    %161 = vector.extract_strided_slice %158 {offsets = [0, 128], sizes = [8, 64], strides = [1, 1]} : vector<8x256xf32> to vector<8x64xf32>
    %162 = vector.extract_strided_slice %158 {offsets = [0, 192], sizes = [8, 64], strides = [1, 1]} : vector<8x256xf32> to vector<8x64xf32>
    %163 = arith.mulf %160, %139 : vector<8x64xf32>
    %164 = arith.mulf %159, %162 : vector<8x64xf32>
    %165 = arith.addf %163, %164 : vector<8x64xf32>
    %166 = math.tanh %165 : vector<8x64xf32>
    %167 = arith.mulf %161, %166 : vector<8x64xf32>
    %168 = vector.extract_strided_slice %167 {offsets = [0, 0], sizes = [8, 32], strides = [1, 1]} : vector<8x64xf32> to vector<8x32xf32>
    %169 = vector.extract_strided_slice %167 {offsets = [0, 32], sizes = [8, 32], strides = [1, 1]} : vector<8x64xf32> to vector<8x32xf32>
    %170 = vector.extract_strided_slice %8 {offsets = [6, 0, 0], sizes = [1, 8, 256], strides = [1, 1, 1]} : vector<8x8x512xf32> to vector<1x8x256xf32>
    %171 = vector.shape_cast %170 : vector<1x8x256xf32> to vector<8x256xf32>
    %172 = vector.extract_strided_slice %8 {offsets = [1, 0, 256], sizes = [1, 8, 256], strides = [1, 1, 1]} : vector<8x8x512xf32> to vector<1x8x256xf32>
    %173 = vector.shape_cast %172 : vector<1x8x256xf32> to vector<8x256xf32>
    %174 = arith.addf %171, %173 : vector<8x256xf32>
    %175 = arith.truncf %167 : vector<8x64xf32> to vector<8x64xbf16>
    %cst_20 = arith.constant dense<0.000000e+00> : vector<8x256xf32>
    %176 = tpu.matmul %175, %9, %cst_20 {dimension_numbers = #tpu.dot_dimension_numbers<[1], [0], [0], [1], [0, 0, 1, 1], [], []>} : vector<8x64xbf16>, vector<64x256xbf16>, vector<8x256xf32> -> vector<8x256xf32>
    %177 = arith.addf %174, %176 : vector<8x256xf32>
    %178 = math.tanh %177 : vector<8x256xf32>
    %179 = arith.negf %177 : vector<8x256xf32>
    %180 = math.exp %179 : vector<8x256xf32>
    %cst_21 = arith.constant 1.000000e+00 : f32
    %181 = vector.broadcast %cst_21 : f32 to vector<8x256xf32>
    %182 = arith.addf %181, %180 : vector<8x256xf32>
    %183 = arith.divf %181, %182 : vector<8x256xf32>
    %184 = arith.select %12, %178, %183 : vector<8x256xi1>, vector<8x256xf32>
    %185 = vector.extract_strided_slice %184 {offsets = [0, 0], sizes = [8, 64], strides = [1, 1]} : vector<8x256xf32> to vector<8x64xf32>
    %186 = vector.extract_strided_slice %184 {offsets = [0, 64], sizes = [8, 64], strides = [1, 1]} : vector<8x256xf32> to vector<8x64xf32>
    %187 = vector.extract_strided_slice %184 {offsets = [0, 128], sizes = [8, 64], strides = [1, 1]} : vector<8x256xf32> to vector<8x64xf32>
    %188 = vector.extract_strided_slice %184 {offsets = [0, 192], sizes = [8, 64], strides = [1, 1]} : vector<8x256xf32> to vector<8x64xf32>
    %189 = arith.mulf %186, %165 : vector<8x64xf32>
    %190 = arith.mulf %185, %188 : vector<8x64xf32>
    %191 = arith.addf %189, %190 : vector<8x64xf32>
    %192 = math.tanh %191 : vector<8x64xf32>
    %193 = arith.mulf %187, %192 : vector<8x64xf32>
    %194 = vector.extract_strided_slice %193 {offsets = [0, 0], sizes = [8, 32], strides = [1, 1]} : vector<8x64xf32> to vector<8x32xf32>
    %195 = vector.extract_strided_slice %193 {offsets = [0, 32], sizes = [8, 32], strides = [1, 1]} : vector<8x64xf32> to vector<8x32xf32>
    %196 = vector.extract_strided_slice %8 {offsets = [7, 0, 0], sizes = [1, 8, 256], strides = [1, 1, 1]} : vector<8x8x512xf32> to vector<1x8x256xf32>
    %197 = vector.shape_cast %196 : vector<1x8x256xf32> to vector<8x256xf32>
    %198 = vector.extract_strided_slice %8 {offsets = [0, 0, 256], sizes = [1, 8, 256], strides = [1, 1, 1]} : vector<8x8x512xf32> to vector<1x8x256xf32>
    %199 = vector.shape_cast %198 : vector<1x8x256xf32> to vector<8x256xf32>
    %200 = arith.addf %197, %199 : vector<8x256xf32>
    %201 = arith.truncf %193 : vector<8x64xf32> to vector<8x64xbf16>
    %cst_22 = arith.constant dense<0.000000e+00> : vector<8x256xf32>
    %202 = tpu.matmul %201, %9, %cst_22 {dimension_numbers = #tpu.dot_dimension_numbers<[1], [0], [0], [1], [0, 0, 1, 1], [], []>} : vector<8x64xbf16>, vector<64x256xbf16>, vector<8x256xf32> -> vector<8x256xf32>
    %203 = arith.addf %200, %202 : vector<8x256xf32>
    %204 = math.tanh %203 : vector<8x256xf32>
    %205 = arith.negf %203 : vector<8x256xf32>
    %206 = math.exp %205 : vector<8x256xf32>
    %cst_23 = arith.constant 1.000000e+00 : f32
    %207 = vector.broadcast %cst_23 : f32 to vector<8x256xf32>
    %208 = arith.addf %207, %206 : vector<8x256xf32>
    %209 = arith.divf %207, %208 : vector<8x256xf32>
    %210 = arith.select %12, %204, %209 : vector<8x256xi1>, vector<8x256xf32>
    %211 = vector.extract_strided_slice %210 {offsets = [0, 0], sizes = [8, 64], strides = [1, 1]} : vector<8x256xf32> to vector<8x64xf32>
    %212 = vector.extract_strided_slice %210 {offsets = [0, 64], sizes = [8, 64], strides = [1, 1]} : vector<8x256xf32> to vector<8x64xf32>
    %213 = vector.extract_strided_slice %210 {offsets = [0, 128], sizes = [8, 64], strides = [1, 1]} : vector<8x256xf32> to vector<8x64xf32>
    %214 = vector.extract_strided_slice %210 {offsets = [0, 192], sizes = [8, 64], strides = [1, 1]} : vector<8x256xf32> to vector<8x64xf32>
    %215 = arith.mulf %212, %191 : vector<8x64xf32>
    %216 = arith.mulf %211, %214 : vector<8x64xf32>
    %217 = arith.addf %215, %216 : vector<8x64xf32>
    %218 = math.tanh %217 : vector<8x64xf32>
    %219 = arith.mulf %213, %218 : vector<8x64xf32>
    %220 = vector.extract_strided_slice %219 {offsets = [0, 0], sizes = [8, 32], strides = [1, 1]} : vector<8x64xf32> to vector<8x32xf32>
    %221 = vector.extract_strided_slice %219 {offsets = [0, 32], sizes = [8, 32], strides = [1, 1]} : vector<8x64xf32> to vector<8x32xf32>
    %222 = vector.shape_cast %38 : vector<8x32xf32> to vector<1x8x32xf32>
    %223 = vector.shape_cast %64 : vector<8x32xf32> to vector<1x8x32xf32>
    %224 = vector.shape_cast %90 : vector<8x32xf32> to vector<1x8x32xf32>
    %225 = vector.shape_cast %116 : vector<8x32xf32> to vector<1x8x32xf32>
    %226 = vector.shape_cast %142 : vector<8x32xf32> to vector<1x8x32xf32>
    %227 = vector.shape_cast %168 : vector<8x32xf32> to vector<1x8x32xf32>
    %228 = vector.shape_cast %194 : vector<8x32xf32> to vector<1x8x32xf32>
    %229 = vector.shape_cast %220 : vector<8x32xf32> to vector<1x8x32xf32>
    %230 = tpu.concatenate %222, %223, %224, %225, %226, %227, %228, %229 in 0 : vector<1x8x32xf32>, vector<1x8x32xf32>, vector<1x8x32xf32>, vector<1x8x32xf32>, vector<1x8x32xf32>, vector<1x8x32xf32>, vector<1x8x32xf32>, vector<1x8x32xf32> -> vector<8x8x32xf32>
    %231 = vector.shape_cast %221 : vector<8x32xf32> to vector<1x8x32xf32>
    %232 = vector.shape_cast %195 : vector<8x32xf32> to vector<1x8x32xf32>
    %233 = vector.shape_cast %169 : vector<8x32xf32> to vector<1x8x32xf32>
    %234 = vector.shape_cast %143 : vector<8x32xf32> to vector<1x8x32xf32>
    %235 = vector.shape_cast %117 : vector<8x32xf32> to vector<1x8x32xf32>
    %236 = vector.shape_cast %91 : vector<8x32xf32> to vector<1x8x32xf32>
    %237 = vector.shape_cast %65 : vector<8x32xf32> to vector<1x8x32xf32>
    %238 = vector.shape_cast %39 : vector<8x32xf32> to vector<1x8x32xf32>
    %239 = tpu.concatenate %231, %232, %233, %234, %235, %236, %237, %238 in 0 : vector<1x8x32xf32>, vector<1x8x32xf32>, vector<1x8x32xf32>, vector<1x8x32xf32>, vector<1x8x32xf32>, vector<1x8x32xf32>, vector<1x8x32xf32>, vector<1x8x32xf32> -> vector<8x8x32xf32>
    %240 = vector.shape_cast %230 : vector<8x8x32xf32> to vector<64x32xf32>
    %241 = arith.truncf %240 : vector<64x32xf32> to vector<64x32xbf16>
    %242 = vector.shape_cast %239 : vector<8x8x32xf32> to vector<64x32xf32>
    %243 = arith.truncf %242 : vector<64x32xf32> to vector<64x32xbf16>
    %c0_24 = arith.constant 0 : index
    %c0_25 = arith.constant 0 : index
    %244 = vector.load %arg5[%c0_24, %c0_25] : memref<32x64xbf16, #tpu.memory_space<vmem>>, vector<32x64xbf16>
    %cst_26 = arith.constant dense<0.000000e+00> : vector<64x64xf32>
    %245 = tpu.matmul %241, %244, %cst_26 {dimension_numbers = #tpu.dot_dimension_numbers<[1], [0], [0], [1], [0, 0, 1, 1], [], []>} : vector<64x32xbf16>, vector<32x64xbf16>, vector<64x64xf32> -> vector<64x64xf32>
    %c0_27 = arith.constant 0 : index
    %c0_28 = arith.constant 0 : index
    %246 = vector.load %arg6[%c0_27, %c0_28] : memref<32x64xbf16, #tpu.memory_space<vmem>>, vector<32x64xbf16>
    %cst_29 = arith.constant dense<0.000000e+00> : vector<64x64xf32>
    %247 = tpu.matmul %243, %246, %cst_29 {dimension_numbers = #tpu.dot_dimension_numbers<[1], [0], [0], [1], [0, 0, 1, 1], [], []>} : vector<64x32xbf16>, vector<32x64xbf16>, vector<64x64xf32> -> vector<64x64xf32>
    %248 = arith.addf %245, %247 : vector<64x64xf32>
    %c0_30 = arith.constant 0 : index
    %c0_31 = arith.constant 0 : index
    %249 = vector.load %arg7[%c0_30, %c0_31] : memref<1x64xf32, #tpu.memory_space<vmem>>, vector<1x64xf32>
    %250 = vector.broadcast %249 : vector<1x64xf32> to vector<64x64xf32>
    %251 = arith.addf %248, %250 : vector<64x64xf32>
    %252 = math.tanh %251 : vector<64x64xf32>
    %253 = arith.truncf %252 : vector<64x64xf32> to vector<64x64xbf16>
    %c0_32 = arith.constant 0 : index
    %c0_33 = arith.constant 0 : index
    %254 = vector.load %arg8[%c0_32, %c0_33] : memref<64x1xbf16, #tpu.memory_space<vmem>>, vector<64x1xbf16>
    %cst_34 = arith.constant dense<0.000000e+00> : vector<64x1xf32>
    %255 = tpu.matmul %253, %254, %cst_34 {dimension_numbers = #tpu.dot_dimension_numbers<[1], [0], [0], [1], [0, 0, 1, 1], [], []>} : vector<64x64xbf16>, vector<64x1xbf16>, vector<64x1xf32> -> vector<64x1xf32>
    %c0_35 = arith.constant 0 : index
    %c0_36 = arith.constant 0 : index
    %256 = vector.load %arg9[%c0_35, %c0_36] : memref<1x1xf32, #tpu.memory_space<vmem>>, vector<1x1xf32>
    %257 = vector.broadcast %256 : vector<1x1xf32> to vector<64x1xf32>
    %258 = arith.addf %255, %257 : vector<64x1xf32>
    %259 = vector.shape_cast %258 : vector<64x1xf32> to vector<8x8x1xf32>
    %cst_37 = arith.constant dense<0xFF800000> : vector<8x1xf32>
    %260 = vector.multi_reduction <maximumf>, %259, %cst_37 [0] : vector<8x8x1xf32> to vector<8x1xf32>
    %261 = vector.shape_cast %260 : vector<8x1xf32> to vector<1x8x1xf32>
    %262 = vector.broadcast %261 : vector<1x8x1xf32> to vector<8x8x1xf32>
    %263 = arith.subf %259, %262 : vector<8x8x1xf32>
    %264 = math.exp %263 : vector<8x8x1xf32>
    %cst_38 = arith.constant dense<0.000000e+00> : vector<8x1xf32>
    %265 = vector.multi_reduction <add>, %264, %cst_38 [0] : vector<8x8x1xf32> to vector<8x1xf32>
    %266 = vector.shape_cast %265 : vector<8x1xf32> to vector<1x8x1xf32>
    %267 = vector.broadcast %266 : vector<1x8x1xf32> to vector<8x8x1xf32>
    %268 = arith.divf %264, %267 : vector<8x8x1xf32>
    %269 = vector.shape_cast %268 : vector<8x8x1xf32> to vector<8x8xf32>
    %c0_39 = arith.constant 0 : index
    %c0_40 = arith.constant 0 : index
    %270 = vector.load %arg17[%c0_39, %c0_40] : memref<8x8xf32, #tpu.memory_space<vmem>>, vector<8x8xf32>
    tpu.vector_store %arg17[%c0_39, %c0_40], %269 {strides = array<i32>} : memref<8x8xf32, #tpu.memory_space<vmem>>, vector<8x8xf32>,
    %271 = vector.broadcast %268 : vector<8x8x1xf32> to vector<8x8x32xf32>
    %272 = arith.mulf %271, %230 : vector<8x8x32xf32>
    %cst_41 = arith.constant dense<0.000000e+00> : vector<8x32xf32>
    %273 = vector.multi_reduction <add>, %272, %cst_41 [0] : vector<8x8x32xf32> to vector<8x32xf32>
    %274 = vector.broadcast %268 : vector<8x8x1xf32> to vector<8x8x32xf32>
    %275 = arith.mulf %274, %239 : vector<8x8x32xf32>
    %cst_42 = arith.constant dense<0.000000e+00> : vector<8x32xf32>
    %276 = vector.multi_reduction <add>, %275, %cst_42 [0] : vector<8x8x32xf32> to vector<8x32xf32>
    %277 = arith.truncf %273 : vector<8x32xf32> to vector<8x32xbf16>
    %c0_43 = arith.constant 0 : index
    %c0_44 = arith.constant 0 : index
    %278 = vector.load %arg10[%c0_43, %c0_44] : memref<32x128xbf16, #tpu.memory_space<vmem>>, vector<32x128xbf16>
    %cst_45 = arith.constant dense<0.000000e+00> : vector<8x128xf32>
    %279 = tpu.matmul %277, %278, %cst_45 {dimension_numbers = #tpu.dot_dimension_numbers<[1], [0], [0], [1], [0, 0, 1, 1], [], []>} : vector<8x32xbf16>, vector<32x128xbf16>, vector<8x128xf32> -> vector<8x128xf32>
    %280 = arith.truncf %276 : vector<8x32xf32> to vector<8x32xbf16>
    %c0_46 = arith.constant 0 : index
    %c0_47 = arith.constant 0 : index
    %281 = vector.load %arg11[%c0_46, %c0_47] : memref<32x128xbf16, #tpu.memory_space<vmem>>, vector<32x128xbf16>
    %cst_48 = arith.constant dense<0.000000e+00> : vector<8x128xf32>
    %282 = tpu.matmul %280, %281, %cst_48 {dimension_numbers = #tpu.dot_dimension_numbers<[1], [0], [0], [1], [0, 0, 1, 1], [], []>} : vector<8x32xbf16>, vector<32x128xbf16>, vector<8x128xf32> -> vector<8x128xf32>
    %283 = arith.addf %279, %282 : vector<8x128xf32>
    %c0_49 = arith.constant 0 : index
    %c0_50 = arith.constant 0 : index
    %284 = vector.load %arg12[%c0_49, %c0_50] : memref<1x128xf32, #tpu.memory_space<vmem>>, vector<1x128xf32>
    %285 = vector.broadcast %284 : vector<1x128xf32> to vector<8x128xf32>
    %286 = arith.addf %283, %285 : vector<8x128xf32>
    %c0_51 = arith.constant 0 : index
    %c0_52 = arith.constant 0 : index
    %287 = vector.load %arg14[%c0_51, %c0_52] : memref<32x2xbf16, #tpu.memory_space<vmem>>, vector<32x2xbf16>
    %c0_53 = arith.constant 0 : index
    %c0_54 = arith.constant 0 : index
    %288 = vector.load %arg15[%c0_53, %c0_54] : memref<1x2xf32, #tpu.memory_space<vmem>>, vector<1x2xf32>
    %cst_55 = arith.constant 0.000000e+00 : f32
    %289 = vector.broadcast %cst_55 : f32 to vector<8x32xf32>
    %290 = math.tanh %286 : vector<8x128xf32>
    %291 = arith.negf %286 : vector<8x128xf32>
    %292 = math.exp %291 : vector<8x128xf32>
    %cst_56 = arith.constant 1.000000e+00 : f32
    %293 = vector.broadcast %cst_56 : f32 to vector<8x128xf32>
    %294 = arith.addf %293, %292 : vector<8x128xf32>
    %295 = arith.divf %293, %294 : vector<8x128xf32>
    %296 = arith.select %15, %290, %295 : vector<8x128xi1>, vector<8x128xf32>
    %297 = vector.extract_strided_slice %296 {offsets = [0, 0], sizes = [8, 32], strides = [1, 1]} : vector<8x128xf32> to vector<8x32xf32>
    %298 = vector.extract_strided_slice %296 {offsets = [0, 32], sizes = [8, 32], strides = [1, 1]} : vector<8x128xf32> to vector<8x32xf32>
    %299 = vector.extract_strided_slice %296 {offsets = [0, 64], sizes = [8, 32], strides = [1, 1]} : vector<8x128xf32> to vector<8x32xf32>
    %300 = vector.extract_strided_slice %296 {offsets = [0, 96], sizes = [8, 32], strides = [1, 1]} : vector<8x128xf32> to vector<8x32xf32>
    %301 = arith.mulf %298, %289 : vector<8x32xf32>
    %302 = arith.mulf %297, %300 : vector<8x32xf32>
    %303 = arith.addf %301, %302 : vector<8x32xf32>
    %304 = math.tanh %303 : vector<8x32xf32>
    %305 = arith.mulf %299, %304 : vector<8x32xf32>
    %306 = arith.truncf %305 : vector<8x32xf32> to vector<8x32xbf16>
    %cst_57 = arith.constant dense<0.000000e+00> : vector<8x2xf32>
    %307 = tpu.matmul %306, %287, %cst_57 {dimension_numbers = #tpu.dot_dimension_numbers<[1], [0], [0], [1], [0, 0, 1, 1], [], []>} : vector<8x32xbf16>, vector<32x2xbf16>, vector<8x2xf32> -> vector<8x2xf32>
    %308 = vector.broadcast %288 : vector<1x2xf32> to vector<8x2xf32>
    %309 = arith.addf %307, %308 : vector<8x2xf32>
    %310 = vector.shape_cast %309 : vector<8x2xf32> to vector<8x1x2xf32>
    %c0_58 = arith.constant 0 : index
    %c0_59 = arith.constant 0 : index
    %c0_60 = arith.constant 0 : index
    %311 = vector.load %arg16[%c0_58, %c0_59, %c0_60] : memref<8x1x2xf32, #tpu.memory_space<vmem>>, vector<8x1x2xf32>
    tpu.vector_store %arg16[%c0_58, %c0_59, %c0_60], %310 {strides = array<i32>} : memref<8x1x2xf32, #tpu.memory_space<vmem>>, vector<8x1x2xf32>,
    return
  }
  func.func @transform_0(%arg0: i32) -> (i32, i32, i32) {
    %c0_i32 = arith.constant 0 : i32
    %c0_i32_0 = arith.constant 0 : i32
    %c0_i32_1 = arith.constant 0 : i32
    return %c0_i32, %arg0, %c0_i32_0 : i32, i32, i32
  }
  func.func @transform_1(%arg0: i32) -> (i32, i32) {
    %c0_i32 = arith.constant 0 : i32
    %c0_i32_0 = arith.constant 0 : i32
    %c0_i32_1 = arith.constant 0 : i32
    return %c0_i32, %c0_i32_0 : i32, i32
  }
  func.func @transform_2(%arg0: i32) -> (i32, i32) {
    %c0_i32 = arith.constant 0 : i32
    %c0_i32_0 = arith.constant 0 : i32
    %c0_i32_1 = arith.constant 0 : i32
    return %c0_i32, %c0_i32_0 : i32, i32
  }
  func.func @transform_3(%arg0: i32) -> (i32, i32) {
    %c0_i32 = arith.constant 0 : i32
    %c0_i32_0 = arith.constant 0 : i32
    %c0_i32_1 = arith.constant 0 : i32
    return %c0_i32, %c0_i32_0 : i32, i32
  }
  func.func @transform_4(%arg0: i32) -> (i32, i32) {
    %c0_i32 = arith.constant 0 : i32
    %c0_i32_0 = arith.constant 0 : i32
    %c0_i32_1 = arith.constant 0 : i32
    return %c0_i32, %c0_i32_0 : i32, i32
  }
  func.func @transform_5(%arg0: i32) -> (i32, i32) {
    %c0_i32 = arith.constant 0 : i32
    %c0_i32_0 = arith.constant 0 : i32
    %c0_i32_1 = arith.constant 0 : i32
    return %c0_i32, %c0_i32_0 : i32, i32
  }
  func.func @transform_6(%arg0: i32) -> (i32, i32) {
    %c0_i32 = arith.constant 0 : i32
    %c0_i32_0 = arith.constant 0 : i32
    %c0_i32_1 = arith.constant 0 : i32
    return %c0_i32, %c0_i32_0 : i32, i32
  }
  func.func @transform_7(%arg0: i32) -> (i32, i32) {
    %c0_i32 = arith.constant 0 : i32
    %c0_i32_0 = arith.constant 0 : i32
    %c0_i32_1 = arith.constant 0 : i32
    return %c0_i32, %c0_i32_0 : i32, i32
  }
  func.func @transform_8(%arg0: i32) -> (i32, i32) {
    %c0_i32 = arith.constant 0 : i32
    %c0_i32_0 = arith.constant 0 : i32
    %c0_i32_1 = arith.constant 0 : i32
    return %c0_i32, %c0_i32_0 : i32, i32
  }
  func.func @transform_9(%arg0: i32) -> (i32, i32) {
    %c0_i32 = arith.constant 0 : i32
    %c0_i32_0 = arith.constant 0 : i32
    %c0_i32_1 = arith.constant 0 : i32
    return %c0_i32, %c0_i32_0 : i32, i32
  }
  func.func @transform_10(%arg0: i32) -> (i32, i32) {
    %c0_i32 = arith.constant 0 : i32
    %c0_i32_0 = arith.constant 0 : i32
    %c0_i32_1 = arith.constant 0 : i32
    return %c0_i32, %c0_i32_0 : i32, i32
  }
  func.func @transform_11(%arg0: i32) -> (i32, i32) {
    %c0_i32 = arith.constant 0 : i32
    %c0_i32_0 = arith.constant 0 : i32
    %c0_i32_1 = arith.constant 0 : i32
    return %c0_i32, %c0_i32_0 : i32, i32
  }
  func.func @transform_12(%arg0: i32) -> (i32, i32) {
    %c0_i32 = arith.constant 0 : i32
    %c0_i32_0 = arith.constant 0 : i32
    %c0_i32_1 = arith.constant 0 : i32
    return %c0_i32, %c0_i32_0 : i32, i32
  }
  func.func @transform_13(%arg0: i32) -> (i32, i32) {
    %c0_i32 = arith.constant 0 : i32
    %c0_i32_0 = arith.constant 0 : i32
    %c0_i32_1 = arith.constant 0 : i32
    return %c0_i32, %c0_i32_0 : i32, i32
  }
  func.func @transform_14(%arg0: i32) -> (i32, i32) {
    %c0_i32 = arith.constant 0 : i32
    %c0_i32_0 = arith.constant 0 : i32
    %c0_i32_1 = arith.constant 0 : i32
    return %c0_i32, %c0_i32_0 : i32, i32
  }
  func.func @transform_15(%arg0: i32) -> (i32, i32, i32) {
    %c0_i32 = arith.constant 0 : i32
    %c0_i32_0 = arith.constant 0 : i32
    %c0_i32_1 = arith.constant 0 : i32
    return %arg0, %c0_i32, %c0_i32_0 : i32, i32, i32
  }
  func.func @transform_16(%arg0: i32) -> (i32, i32) {
    %c0_i32 = arith.constant 0 : i32
    %c0_i32_0 = arith.constant 0 : i32
    return %c0_i32, %arg0 : i32, i32
  }
}

</mosaic_0001>

<llo_original>
// kernel: _lambda_.1
$region0: #{_lambda_.1}
  #allocation0 [shape = 'u32[]', space=smem, size = 0x4, offset = 0x4, fixed_abs, tag = 'smem constant byte address 0x4 - core index']
  #allocation1 [shape = 'u32[144,128]{1,0:T(1,128)}', space=vmem, size = 0x12000, scoped, tag = 'internal scratch']
  #allocation2 [shape = 'f32[1,1]{1,0:T(1,128)S(1)}', space=vmem, size = 0x200, scoped, tag = 'scoped memory for _lambda_.1']
  %s0 = inlined_call_operand.vmem [shape: f32[8,8,2], index: 0, kind: input, shape index: {}]
  %s1 = inlined_call_operand.vmem [shape: bf16[2,512], index: 1, kind: input, shape index: {}]
  %s2 = inlined_call_operand.vmem [shape: f32[1,512], index: 2, kind: input, shape index: {}]
  %s3 = inlined_call_operand.vmem [shape: bf16[64,256], index: 3, kind: input, shape index: {}]
  %s4 = inlined_call_operand.vmem [shape: bf16[32,64], index: 4, kind: input, shape index: {}]
  %s5 = inlined_call_operand.vmem [shape: bf16[32,64], index: 5, kind: input, shape index: {}]
  %s6 = inlined_call_operand.vmem [shape: f32[1,64], index: 6, kind: input, shape index: {}]
  %s7 = inlined_call_operand.vmem [shape: bf16[64,1], index: 7, kind: input, shape index: {}]
  %s8 = inlined_call_operand.<no memory space> [shape: f32[1,1], index: 8, kind: input, shape index: {}]
  %s9 = inlined_call_operand.vmem [shape: bf16[32,128], index: 9, kind: input, shape index: {}]
  %s10 = inlined_call_operand.vmem [shape: bf16[32,128], index: 10, kind: input, shape index: {}]
  %s11 = inlined_call_operand.vmem [shape: f32[1,128], index: 11, kind: input, shape index: {}]
  %s12 = inlined_call_operand.vmem [shape: bf16[32,128], index: 12, kind: input, shape index: {}]
  %s13 = inlined_call_operand.vmem [shape: bf16[32,2], index: 13, kind: input, shape index: {}]
  %s14 = inlined_call_operand.vmem [shape: f32[1,2], index: 14, kind: input, shape index: {}]
  %s15 = inlined_call_operand.vmem [shape: f32[8,1,2], index: 15, kind: output, shape index: {0}]
  %s16 = inlined_call_operand.vmem [shape: f32[8,8], index: 16, kind: output, shape index: {1}]
  %17 = xla_tuple %s15, %s16
  %s18 = sld [smem:[#allocation0]]
  $region78: #{_lambda_.1} parent=0
    _
  %s20 = ssub.s32 1, %s18
  %s21 = scalar_select 0, %s20, %s18
  %v22 = vstv %s8
  %23 = vst [vmem:[#allocation2] sm:$0x1] %v22
  // Predicated region
  $region2: #{_lambda_.1} parent=0 // pred_check
    _
  $region3: #{_lambda_.1} parent=0 // pred_check_branch
    %25 = sbr.rel (0) target = $region5
  $region4: #{_lambda_.1} parent=0 // pred_region
    _
  $region5: #{_lambda_.1} parent=0 // pred_fallthru
    _
  // Predicated region
  $region6: #{_lambda_.1} parent=0 // pred_check
    _
  $region7: #{_lambda_.1} parent=0 // pred_check_branch
    %27 = sbr.rel (0) target = $region9
  $region8: #{_lambda_.1} parent=0 // pred_region
    _
  $region9: #{_lambda_.1} parent=0 // pred_fallthru
    _
  // Predicated region
  $region10: #{_lambda_.1} parent=0 // pred_check
    _
  $region11: #{_lambda_.1} parent=0 // pred_check_branch
    %29 = sbr.rel (0) target = $region13
  $region12: #{_lambda_.1} parent=0 // pred_region
    _
  $region13: #{_lambda_.1} parent=0 // pred_fallthru
    _
  // Predicated region
  $region14: #{_lambda_.1} parent=0 // pred_check
    _
  $region15: #{_lambda_.1} parent=0 // pred_check_branch
    %31 = sbr.rel (0) target = $region17
  $region16: #{_lambda_.1} parent=0 // pred_region
    _
  $region17: #{_lambda_.1} parent=0 // pred_fallthru
    _
  // Predicated region
  $region18: #{_lambda_.1} parent=0 // pred_check
    _
  $region19: #{_lambda_.1} parent=0 // pred_check_branch
    %33 = sbr.rel (0) target = $region21
  $region20: #{_lambda_.1} parent=0 // pred_region
    _
  $region21: #{_lambda_.1} parent=0 // pred_fallthru
    _
  // Predicated region
  $region22: #{_lambda_.1} parent=0 // pred_check
    _
  $region23: #{_lambda_.1} parent=0 // pred_check_branch
    %35 = sbr.rel (0) target = $region25
  $region24: #{_lambda_.1} parent=0 // pred_region
    _
  $region25: #{_lambda_.1} parent=0 // pred_fallthru
    _
  // Predicated region
  $region26: #{_lambda_.1} parent=0 // pred_check
    _
  $region27: #{_lambda_.1} parent=0 // pred_check_branch
    %37 = sbr.rel (0) target = $region29
  $region28: #{_lambda_.1} parent=0 // pred_region
    _
  $region29: #{_lambda_.1} parent=0 // pred_fallthru
    _
  // Predicated region
  $region30: #{_lambda_.1} parent=0 // pred_check
    _
  $region31: #{_lambda_.1} parent=0 // pred_check_branch
    %39 = sbr.rel (0) target = $region33
  $region32: #{_lambda_.1} parent=0 // pred_region
    _
  $region33: #{_lambda_.1} parent=0 // pred_fallthru
    _
  // Predicated region
  $region34: #{_lambda_.1} parent=0 // pred_check
    _
  $region35: #{_lambda_.1} parent=0 // pred_check_branch
    %41 = sbr.rel (0) target = $region37
  $region36: #{_lambda_.1} parent=0 // pred_region
    _
  $region37: #{_lambda_.1} parent=0 // pred_fallthru
    _
  // Predicated region
  $region38: #{_lambda_.1} parent=0 // pred_check
    _
  $region39: #{_lambda_.1} parent=0 // pred_check_branch
    %43 = sbr.rel (0) target = $region41
  $region40: #{_lambda_.1} parent=0 // pred_region
    _
  $region41: #{_lambda_.1} parent=0 // pred_fallthru
    _
  // Predicated region
  $region42: #{_lambda_.1} parent=0 // pred_check
    _
  $region43: #{_lambda_.1} parent=0 // pred_check_branch
    %45 = sbr.rel (0) target = $region45
  $region44: #{_lambda_.1} parent=0 // pred_region
    _
  $region45: #{_lambda_.1} parent=0 // pred_fallthru
    _
  // Predicated region
  $region46: #{_lambda_.1} parent=0 // pred_check
    _
  $region47: #{_lambda_.1} parent=0 // pred_check_branch
    %47 = sbr.rel (0) target = $region49
  $region48: #{_lambda_.1} parent=0 // pred_region
    _
  $region49: #{_lambda_.1} parent=0 // pred_fallthru
    _
  // Predicated region
  $region50: #{_lambda_.1} parent=0 // pred_check
    _
  $region51: #{_lambda_.1} parent=0 // pred_check_branch
    %49 = sbr.rel (0) target = $region53
  $region52: #{_lambda_.1} parent=0 // pred_region
    _
  $region53: #{_lambda_.1} parent=0 // pred_fallthru
    _
  // Predicated region
  $region54: #{_lambda_.1} parent=0 // pred_check
    _
  $region55: #{_lambda_.1} parent=0 // pred_check_branch
    %51 = sbr.rel (0) target = $region57
  $region56: #{_lambda_.1} parent=0 // pred_region
    _
  $region57: #{_lambda_.1} parent=0 // pred_fallthru
    _
  // Predicated region
  $region58: #{_lambda_.1} parent=0 // pred_check
    _
  $region59: #{_lambda_.1} parent=0 // pred_check_branch
    %53 = sbr.rel (0) target = $region61
  $region60: #{_lambda_.1} parent=0 // pred_region
    _
  $region61: #{_lambda_.1} parent=0 // pred_fallthru
    _
  %v55 = vld [vmem:[%s0] sm:$0xff]
  %v56 = vld [vmem:[%s0 + $0x8] sm:$0xff]
  %v57 = vld [vmem:[%s0 + $0x10] sm:$0xff]
  %v58 = vld [vmem:[%s0 + $0x18] sm:$0xff]
  %v59 = vld [vmem:[%s0 + $0x20] sm:$0xff]
  %v60 = vld [vmem:[%s0 + $0x28] sm:$0xff]
  %v61 = vld [vmem:[%s0 + $0x30] sm:$0xff]
  %v62 = vld [vmem:[%s0 + $0x38] sm:$0xff]
  %v63 = vpack.c.bf16 %v56, %v55
  %v64 = vpack.c.bf16 %v58, %v57
  %v65 = vpack.c.bf16 %v60, %v59
  %v66 = vpack.c.bf16 %v62, %v61
  %v67 = vld [vmem:[%s1] sm:$0xf]
  %v68 = vld [vmem:[%s2] sm:$0xf]
  %v70 = vlaneseq
  %v71 = vshrl.u32 %v70, 7
  %v72 = vsub.s32 0, %v71
  %v73 = vrot.slane %v68, %v72
  %v74 = vlaneseq
  %v75 = vshrl.u32 %v74, 7
  %v76 = vsub.s32 1, %v75
  %v77 = vrot.slane %v68, %v76
  %v78 = vlaneseq
  %v79 = vshrl.u32 %v78, 7
  %v80 = vsub.s32 2, %v79
  %v81 = vrot.slane %v68, %v80
  %v82 = vlaneseq
  %v83 = vshrl.u32 %v82, 7
  %v84 = vsub.s32 3, %v83
  %v85 = vrot.slane %v68, %v84
  %v92 = vunpack.c.l.s4 1966171168
  %v93 = vunpack.c.0.s8 %v92
  %v94 = vlaneseq
  %v95 = vshrl.u32 %v94, 7
  %v96 = vsub.s32 %v93, %v95
  %v97 = vrot.slane %v67, %v96
  %v98 = vcombine.high %v97, %v97
  %v100 = vunpack.c.l.s4 1966171168
  %v101 = vunpack.c.0.s8 %v100
  %v102 = vlaneseq
  %v103 = vshrl.u32 %v102, 7
  %v104 = vsub.s32 %v101, %v103
  %v105 = vrot.slane %v97, %v104
  %v107 = vunpack.c.l.s4 1966171168
  %v108 = vunpack.c.0.s8 %v107
  %v109 = vlaneseq
  %v110 = vshrl.u32 %v109, 7
  %v111 = vsub.s32 %v108, %v110
  %v112 = vrot.slane %v98, %v111
  %v113 = vcombine.high %v105, %v105
  %v114 = vcombine.high %v112, %v112
  %vm115 = vcmask 15360
  %v117 = vsel %vm115, %v63, 0
  %v120 = vsel %vm115, %v64, 0
  %v123 = vsel %vm115, %v65, 0
  %v126 = vsel %vm115, %v66, 0
  %vm128 = vcmask 1040384
  %v130 = vsel %vm128, %v105, 0
  %v133 = vsel %vm128, %v112, 0
  %v136 = vsel %vm128, %v113, 0
  %v139 = vsel %vm128, %v114, 0
  %141 = vmatprep.subr.bf16.mxu0 %v133
  %142 = vmatpush1.bf16.msra.mxu0 %v130
  %143 = vmatprep.subr.bf16.mxu0 0
  %144 = vmatpush1.bf16.msra.mxu0 0
  %145 = vmatprep.subr.bf16.mxu0 0
  %146 = vmatpush1.bf16.msra.mxu0 0
  %147 = vmatprep.subr.bf16.mxu0 0
  %148 = vmatpush1.bf16.msra.mxu0 0
  %149 = vmatprep.subr.bf16.mxu0 0
  %150 = vmatpush1.bf16.msra.mxu0 0
  %151 = vmatprep.subr.bf16.mxu0 0
  %152 = vmatpush1.bf16.msra.mxu0 0
  %153 = vmatprep.subr.bf16.mxu0 0
  %154 = vmatpush1.bf16.msra.mxu0 0
  %155 = vmatprep.subr.bf16.mxu0 0
  %156 = vmatpush1.bf16.msra.mxu0 0
  %157 = vmatprep.subr.bf16.mxu0 0
  %158 = vmatpush1.bf16.msra.mxu0 0
  %159 = vmatprep.subr.bf16.mxu0 0
  %160 = vmatpush1.bf16.msra.mxu0 0
  %161 = vmatprep.subr.bf16.mxu0 0
  %162 = vmatpush1.bf16.msra.mxu0 0
  %163 = vmatprep.subr.bf16.mxu0 0
  %164 = vmatpush1.bf16.msra.mxu0 0
  %165 = vmatprep.subr.bf16.mxu0 0
  %166 = vmatpush1.bf16.msra.mxu0 0
  %167 = vmatprep.subr.bf16.mxu0 0
  %168 = vmatpush1.bf16.msra.mxu0 0
  %169 = vmatprep.subr.bf16.mxu0 0
  %170 = vmatpush1.bf16.msra.mxu0 0
  %171 = vmatprep.subr.bf16.mxu0 0
  %172 = vmatpush1.bf16.msra.mxu0 0
  %173 = vmatprep.mubr.bf16.mxu0 0
  %174 = vmatmul.mubr.bf16.gmra.mrb[0].mxu0 %v117
  %v175 = vpop.f32.mrb[0].mxu0
  %v176 = vadd.f32 %v73, %v175
  %v177 = vpop.f32.mrb[0].mxu0
  %v178 = vadd.f32 %v77, %v177
  %v179 = vpop.f32.mrb[0].mxu0
  %v180 = vadd.f32 %v73, %v179
  %v181 = vpop.f32.mrb[0].mxu0
  %v182 = vadd.f32 %v77, %v181
  %183 = vmatprep.mubr.bf16.mxu0 0
  %184 = vmatmul.mubr.bf16.gmra.mrb[0].mxu0 %v120
  %v185 = vpop.f32.mrb[0].mxu0
  %v186 = vadd.f32 %v73, %v185
  %v187 = vpop.f32.mrb[0].mxu0
  %v188 = vadd.f32 %v77, %v187
  %v189 = vpop.f32.mrb[0].mxu0
  %v190 = vadd.f32 %v73, %v189
  %v191 = vpop.f32.mrb[0].mxu0
  %v192 = vadd.f32 %v77, %v191
  %193 = vmatprep.mubr.bf16.mxu0 0
  %194 = vmatmul.mubr.bf16.gmra.mrb[0].mxu0 %v123
  %v195 = vpop.f32.mrb[0].mxu0
  %v196 = vadd.f32 %v73, %v195
  %v197 = vpop.f32.mrb[0].mxu0
  %v198 = vadd.f32 %v77, %v197
  %v199 = vpop.f32.mrb[0].mxu0
  %v200 = vadd.f32 %v73, %v199
  %v201 = vpop.f32.mrb[0].mxu0
  %v202 = vadd.f32 %v77, %v201
  %203 = vmatprep.mubr.bf16.mxu0 0
  %204 = vmatmul.mubr.bf16.gmra.mrb[0].mxu0 %v126
  %v205 = vpop.f32.mrb[0].mxu0
  %v206 = vadd.f32 %v73, %v205
  %v207 = vpop.f32.mrb[0].mxu0
  %v208 = vadd.f32 %v77, %v207
  %v209 = vpop.f32.mrb[0].mxu0
  %v210 = vadd.f32 %v73, %v209
  %v211 = vpop.f32.mrb[0].mxu0
  %v212 = vadd.f32 %v77, %v211
  %213 = vdwg.mxu0
  %214 = vmatprep.subr.bf16.mxu0 %v139
  %215 = vmatpush1.bf16.msra.mxu0 %v136
  %216 = vmatprep.subr.bf16.mxu0 0
  %217 = vmatpush1.bf16.msra.mxu0 0
  %218 = vmatprep.subr.bf16.mxu0 0
  %219 = vmatpush1.bf16.msra.mxu0 0
  %220 = vmatprep.subr.bf16.mxu0 0
  %221 = vmatpush1.bf16.msra.mxu0 0
  %222 = vmatprep.subr.bf16.mxu0 0
  %223 = vmatpush1.bf16.msra.mxu0 0
  %224 = vmatprep.subr.bf16.mxu0 0
  %225 = vmatpush1.bf16.msra.mxu0 0
  %226 = vmatprep.subr.bf16.mxu0 0
  %227 = vmatpush1.bf16.msra.mxu0 0
  %228 = vmatprep.subr.bf16.mxu0 0
  %229 = vmatpush1.bf16.msra.mxu0 0
  %230 = vmatprep.subr.bf16.mxu0 0
  %231 = vmatpush1.bf16.msra.mxu0 0
  %232 = vmatprep.subr.bf16.mxu0 0
  %233 = vmatpush1.bf16.msra.mxu0 0
  %234 = vmatprep.subr.bf16.mxu0 0
  %235 = vmatpush1.bf16.msra.mxu0 0
  %236 = vmatprep.subr.bf16.mxu0 0
  %237 = vmatpush1.bf16.msra.mxu0 0
  %238 = vmatprep.subr.bf16.mxu0 0
  %239 = vmatpush1.bf16.msra.mxu0 0
  %240 = vmatprep.subr.bf16.mxu0 0
  %241 = vmatpush1.bf16.msra.mxu0 0
  %242 = vmatprep.subr.bf16.mxu0 0
  %243 = vmatpush1.bf16.msra.mxu0 0
  %244 = vmatprep.subr.bf16.mxu0 0
  %245 = vmatpush1.bf16.msra.mxu0 0
  %246 = vmatprep.mubr.bf16.mxu0 0
  %247 = vmatmul.mubr.bf16.gmra.mrb[0].mxu0 %v117
  %v248 = vpop.f32.mrb[0].mxu0
  %v249 = vadd.f32 %v81, %v248
  %v250 = vpop.f32.mrb[0].mxu0
  %v251 = vadd.f32 %v85, %v250
  %v252 = vpop.f32.mrb[0].mxu0
  %v253 = vadd.f32 %v81, %v252
  %v254 = vpop.f32.mrb[0].mxu0
  %v255 = vadd.f32 %v85, %v254
  %256 = vmatprep.mubr.bf16.mxu0 0
  %257 = vmatmul.mubr.bf16.gmra.mrb[0].mxu0 %v120
  %v258 = vpop.f32.mrb[0].mxu0
  %v259 = vadd.f32 %v81, %v258
  %v260 = vpop.f32.mrb[0].mxu0
  %v261 = vadd.f32 %v85, %v260
  %v262 = vpop.f32.mrb[0].mxu0
  %v263 = vadd.f32 %v81, %v262
  %v264 = vpop.f32.mrb[0].mxu0
  %v265 = vadd.f32 %v85, %v264
  %266 = vmatprep.mubr.bf16.mxu0 0
  %267 = vmatmul.mubr.bf16.gmra.mrb[0].mxu0 %v123
  %v268 = vpop.f32.mrb[0].mxu0
  %v269 = vadd.f32 %v81, %v268
  %v270 = vpop.f32.mrb[0].mxu0
  %v271 = vadd.f32 %v85, %v270
  %v272 = vpop.f32.mrb[0].mxu0
  %v273 = vadd.f32 %v81, %v272
  %v274 = vpop.f32.mrb[0].mxu0
  %v275 = vadd.f32 %v85, %v274
  %276 = vmatprep.mubr.bf16.mxu0 0
  %277 = vmatmul.mubr.bf16.gmra.mrb[0].mxu0 %v126
  %v278 = vpop.f32.mrb[0].mxu0
  %v279 = vadd.f32 %v81, %v278
  %v280 = vpop.f32.mrb[0].mxu0
  %v281 = vadd.f32 %v85, %v280
  %v282 = vpop.f32.mrb[0].mxu0
  %v283 = vadd.f32 %v81, %v282
  %v284 = vpop.f32.mrb[0].mxu0
  %v285 = vadd.f32 %v85, %v284
  %286 = vdwg.mxu0
  %v287 = vld [vmem:[%s3] sm:$0xff]
  %v288 = vld [vmem:[%s3 + $0x8] sm:$0xff]
  %v289 = vld [vmem:[%s3 + $0x10] sm:$0xff]
  %v290 = vld [vmem:[%s3 + $0x18] sm:$0xff]
  %v291 = vld [vmem:[%s3 + $0x20] sm:$0xff]
  %v292 = vld [vmem:[%s3 + $0x28] sm:$0xff]
  %v293 = vld [vmem:[%s3 + $0x30] sm:$0xff]
  %v294 = vld [vmem:[%s3 + $0x38] sm:$0xff]
  %v295 = vlaneseq
  %v296 = vand.u32 %v295, 127
  %v297 = vadd.s32 %v296, 128
  %vm298 = vcmp.ge.s32.totalorder %v296, 192
  %vm299 = vcmp.ge.s32.totalorder %v297, 192
  %vm300 = vcmp.ge.s32.totalorder %v296, 96
  %v301 = vadd.f32 %v176, %v283
  %v302 = vadd.f32 %v178, %v285
  %v303 = vtanh.pop %v301
  %v304 = vtanh.pop %v302
  %v305 = vxor.u32 %v301, 2147483648
  %v306 = vxor.u32 %v302, 2147483648
  %v307 = vmul.f32 %v305, 1.442695
  %v308 = vpow.pop %v307
  %v309 = vmul.f32 %v306, 1.442695
  %v310 = vpow.pop %v309
  %v311 = vadd.f32 %v308, 1.0
  %v312 = vadd.f32 %v310, 1.0
  %v313 = vrcp.pop %v311
  %v314 = vmul.f32 1.0, %v313
  %v315 = vrcp.pop %v312
  %v316 = vmul.f32 1.0, %v315
  %v317 = vsel %vm298, %v303, %v314
  %v318 = vsel %vm299, %v304, %v316
  %v319 = vmul.f32 %v317, 0.0
  %321 = vrot.lane.b32.xlu0 %v318, 64
  %v322 = vpop.permute.xlu0 %321
  %v324 = vmul.f32 %v317, %v322
  %326 = vrot.lane.b32.xlu0 %v324, 64
  %v327 = vpop.permute.xlu0 %326
  %v329 = vadd.f32 %v319, %v327
  %v330 = vtanh.pop %v329
  %332 = vrot.lane.b32.xlu0 %v330, 64
  %v333 = vpop.permute.xlu0 %332
  %v335 = vmul.f32 %v318, %v333
  %v336 = vadd.f32 %v180, %v279
  %v337 = vadd.f32 %v182, %v281
  %v338 = vpack.c.bf16 %v335, %v335
  %v347 = vunpack.c.l.b16 %v287
  %v348 = vunpack.c.h.b16 %v287
  %v349 = vunpack.c.l.b16 %v288
  %v350 = vunpack.c.h.b16 %v288
  %v351 = vunpack.c.l.b16 %v289
  %v352 = vunpack.c.h.b16 %v289
  %v353 = vunpack.c.l.b16 %v290
  %v354 = vunpack.c.h.b16 %v290
  %v355 = vunpack.c.l.b16 %v291
  %v356 = vunpack.c.h.b16 %v291
  %v357 = vunpack.c.l.b16 %v292
  %v358 = vunpack.c.h.b16 %v292
  %v359 = vunpack.c.l.b16 %v293
  %v360 = vunpack.c.h.b16 %v293
  %v361 = vunpack.c.l.b16 %v294
  %v362 = vunpack.c.h.b16 %v294
  %v363 = vpack.c.b16 %v349, %v347
  %v364 = vpack.c.b16 %v350, %v348
  %v365 = vpack.c.b16 %v353, %v351
  %v366 = vpack.c.b16 %v354, %v352
  %v367 = vpack.c.b16 %v357, %v355
  %v368 = vpack.c.b16 %v358, %v356
  %v369 = vpack.c.b16 %v361, %v359
  %v370 = vpack.c.b16 %v362, %v360
  %vm379 = vcmask 523264
  %v381 = vsel %vm379, %v338, 0
  %383 = vmatprep.subr.bf16.mxu0 %v364
  %384 = vmatpush1.bf16.msra.mxu0 %v363
  %385 = vmatprep.subr.bf16.mxu0 %v366
  %386 = vmatpush1.bf16.msra.mxu0 %v365
  %387 = vmatprep.subr.bf16.mxu0 %v368
  %388 = vmatpush1.bf16.msra.mxu0 %v367
  %389 = vmatprep.subr.bf16.mxu0 %v370
  %390 = vmatpush1.bf16.msra.mxu0 %v369
  %391 = vmatprep.subr.bf16.mxu0 0
  %392 = vmatpush1.bf16.msra.mxu0 0
  %393 = vmatprep.subr.bf16.mxu0 0
  %394 = vmatpush1.bf16.msra.mxu0 0
  %395 = vmatprep.subr.bf16.mxu0 0
  %396 = vmatpush1.bf16.msra.mxu0 0
  %397 = vmatprep.subr.bf16.mxu0 0
  %398 = vmatpush1.bf16.msra.mxu0 0
  %399 = vmatprep.subr.bf16.mxu0 0
  %400 = vmatpush1.bf16.msra.mxu0 0
  %401 = vmatprep.subr.bf16.mxu0 0
  %402 = vmatpush1.bf16.msra.mxu0 0
  %403 = vmatprep.subr.bf16.mxu0 0
  %404 = vmatpush1.bf16.msra.mxu0 0
  %405 = vmatprep.subr.bf16.mxu0 0
  %406 = vmatpush1.bf16.msra.mxu0 0
  %407 = vmatprep.subr.bf16.mxu0 0
  %408 = vmatpush1.bf16.msra.mxu0 0
  %409 = vmatprep.subr.bf16.mxu0 0
  %410 = vmatpush1.bf16.msra.mxu0 0
  %411 = vmatprep.subr.bf16.mxu0 0
  %412 = vmatpush1.bf16.msra.mxu0 0
  %413 = vmatprep.subr.bf16.mxu0 0
  %414 = vmatpush1.bf16.msra.mxu0 0
  %415 = vmatprep.mubr.bf16.mxu0 0
  %416 = vmatmul.mubr.bf16.gmra.mrb[0].mxu0 %v381
  %v417 = vpop.f32.mrb[0].mxu0
  %v418 = vadd.f32 0.0, %v417
  %v419 = vpop.f32.mrb[0].mxu0
  %v420 = vadd.f32 0.0, %v419
  %v421 = vpop.f32.mrb[0].mxu0
  %v422 = vpop.f32.mrb[0].mxu0
  %423 = vdwg.mxu0
  %v424 = vadd.f32 %v336, %v418
  %v425 = vadd.f32 %v337, %v420
  %v426 = vtanh.pop %v424
  %v427 = vtanh.pop %v425
  %v428 = vxor.u32 %v424, 2147483648
  %v429 = vxor.u32 %v425, 2147483648
  %v430 = vmul.f32 %v428, 1.442695
  %v431 = vpow.pop %v430
  %v432 = vmul.f32 %v429, 1.442695
  %v433 = vpow.pop %v432
  %v434 = vadd.f32 %v431, 1.0
  %v435 = vadd.f32 %v433, 1.0
  %v436 = vrcp.pop %v434
  %v437 = vmul.f32 1.0, %v436
  %v438 = vrcp.pop %v435
  %v439 = vmul.f32 1.0, %v438
  %v440 = vsel %vm298, %v426, %v437
  %v441 = vsel %vm299, %v427, %v439
  %v442 = vmul.f32 %v440, %v329
  %444 = vrot.lane.b32.xlu0 %v441, 64
  %v445 = vpop.permute.xlu0 %444
  %v447 = vmul.f32 %v440, %v445
  %449 = vrot.lane.b32.xlu0 %v447, 64
  %v450 = vpop.permute.xlu0 %449
  %v452 = vadd.f32 %v442, %v450
  %v453 = vtanh.pop %v452
  %455 = vrot.lane.b32.xlu0 %v453, 64
  %v456 = vpop.permute.xlu0 %455
  %v458 = vmul.f32 %v441, %v456
  %v459 = vadd.f32 %v186, %v273
  %v460 = vadd.f32 %v188, %v275
  %v461 = vpack.c.bf16 %v458, %v458
  %v463 = vsel %vm379, %v461, 0
  %465 = vmatprep.subr.bf16.mxu0 %v364
  %466 = vmatpush1.bf16.msra.mxu0 %v363
  %467 = vmatprep.subr.bf16.mxu0 %v366
  %468 = vmatpush1.bf16.msra.mxu0 %v365
  %469 = vmatprep.subr.bf16.mxu0 %v368
  %470 = vmatpush1.bf16.msra.mxu0 %v367
  %471 = vmatprep.subr.bf16.mxu0 %v370
  %472 = vmatpush1.bf16.msra.mxu0 %v369
  %473 = vmatprep.subr.bf16.mxu0 0
  %474 = vmatpush1.bf16.msra.mxu0 0
  %475 = vmatprep.subr.bf16.mxu0 0
  %476 = vmatpush1.bf16.msra.mxu0 0
  %477 = vmatprep.subr.bf16.mxu0 0
  %478 = vmatpush1.bf16.msra.mxu0 0
  %479 = vmatprep.subr.bf16.mxu0 0
  %480 = vmatpush1.bf16.msra.mxu0 0
  %481 = vmatprep.subr.bf16.mxu0 0
  %482 = vmatpush1.bf16.msra.mxu0 0
  %483 = vmatprep.subr.bf16.mxu0 0
  %484 = vmatpush1.bf16.msra.mxu0 0
  %485 = vmatprep.subr.bf16.mxu0 0
  %486 = vmatpush1.bf16.msra.mxu0 0
  %487 = vmatprep.subr.bf16.mxu0 0
  %488 = vmatpush1.bf16.msra.mxu0 0
  %489 = vmatprep.subr.bf16.mxu0 0
  %490 = vmatpush1.bf16.msra.mxu0 0
  %491 = vmatprep.subr.bf16.mxu0 0
  %492 = vmatpush1.bf16.msra.mxu0 0
  %493 = vmatprep.subr.bf16.mxu0 0
  %494 = vmatpush1.bf16.msra.mxu0 0
  %495 = vmatprep.subr.bf16.mxu0 0
  %496 = vmatpush1.bf16.msra.mxu0 0
  %497 = vmatprep.mubr.bf16.mxu0 0
  %498 = vmatmul.mubr.bf16.gmra.mrb[0].mxu0 %v463
  %v499 = vpop.f32.mrb[0].mxu0
  %v500 = vadd.f32 0.0, %v499
  %v501 = vpop.f32.mrb[0].mxu0
  %v502 = vadd.f32 0.0, %v501
  %v503 = vpop.f32.mrb[0].mxu0
  %v504 = vpop.f32.mrb[0].mxu0
  %505 = vdwg.mxu0
  %v506 = vadd.f32 %v459, %v500
  %v507 = vadd.f32 %v460, %v502
  %v508 = vtanh.pop %v506
  %v509 = vtanh.pop %v507
  %v510 = vxor.u32 %v506, 2147483648
  %v511 = vxor.u32 %v507, 2147483648
  %v512 = vmul.f32 %v510, 1.442695
  %v513 = vpow.pop %v512
  %v514 = vmul.f32 %v511, 1.442695
  %v515 = vpow.pop %v514
  %v516 = vadd.f32 %v513, 1.0
  %v517 = vadd.f32 %v515, 1.0
  %v518 = vrcp.pop %v516
  %v519 = vmul.f32 1.0, %v518
  %v520 = vrcp.pop %v517
  %v521 = vmul.f32 1.0, %v520
  %v522 = vsel %vm298, %v508, %v519
  %v523 = vsel %vm299, %v509, %v521
  %v524 = vmul.f32 %v522, %v452
  %526 = vrot.lane.b32.xlu0 %v523, 64
  %v527 = vpop.permute.xlu0 %526
  %v529 = vmul.f32 %v522, %v527
  %531 = vrot.lane.b32.xlu0 %v529, 64
  %v532 = vpop.permute.xlu0 %531
  %v534 = vadd.f32 %v524, %v532
  %v535 = vtanh.pop %v534
  %537 = vrot.lane.b32.xlu0 %v535, 64
  %v538 = vpop.permute.xlu0 %537
  %v540 = vmul.f32 %v523, %v538
  %v541 = vadd.f32 %v190, %v269
  %v542 = vadd.f32 %v192, %v271
  %v543 = vpack.c.bf16 %v540, %v540
  %v545 = vsel %vm379, %v543, 0
  %547 = vmatprep.subr.bf16.mxu0 %v364
  %548 = vmatpush1.bf16.msra.mxu0 %v363
  %549 = vmatprep.subr.bf16.mxu0 %v366
  %550 = vmatpush1.bf16.msra.mxu0 %v365
  %551 = vmatprep.subr.bf16.mxu0 %v368
  %552 = vmatpush1.bf16.msra.mxu0 %v367
  %553 = vmatprep.subr.bf16.mxu0 %v370
  %554 = vmatpush1.bf16.msra.mxu0 %v369
  %555 = vmatprep.subr.bf16.mxu0 0
  %556 = vmatpush1.bf16.msra.mxu0 0
  %557 = vmatprep.subr.bf16.mxu0 0
  %558 = vmatpush1.bf16.msra.mxu0 0
  %559 = vmatprep.subr.bf16.mxu0 0
  %560 = vmatpush1.bf16.msra.mxu0 0
  %561 = vmatprep.subr.bf16.mxu0 0
  %562 = vmatpush1.bf16.msra.mxu0 0
  %563 = vmatprep.subr.bf16.mxu0 0
  %564 = vmatpush1.bf16.msra.mxu0 0
  %565 = vmatprep.subr.bf16.mxu0 0
  %566 = vmatpush1.bf16.msra.mxu0 0
  %567 = vmatprep.subr.bf16.mxu0 0
  %568 = vmatpush1.bf16.msra.mxu0 0
  %569 = vmatprep.subr.bf16.mxu0 0
  %570 = vmatpush1.bf16.msra.mxu0 0
  %571 = vmatprep.subr.bf16.mxu0 0
  %572 = vmatpush1.bf16.msra.mxu0 0
  %573 = vmatprep.subr.bf16.mxu0 0
  %574 = vmatpush1.bf16.msra.mxu0 0
  %575 = vmatprep.subr.bf16.mxu0 0
  %576 = vmatpush1.bf16.msra.mxu0 0
  %577 = vmatprep.subr.bf16.mxu0 0
  %578 = vmatpush1.bf16.msra.mxu0 0
  %579 = vmatprep.mubr.bf16.mxu0 0
  %580 = vmatmul.mubr.bf16.gmra.mrb[0].mxu0 %v545
  %v581 = vpop.f32.mrb[0].mxu0
  %v582 = vadd.f32 0.0, %v581
  %v583 = vpop.f32.mrb[0].mxu0
  %v584 = vadd.f32 0.0, %v583
  %v585 = vpop.f32.mrb[0].mxu0
  %v586 = vpop.f32.mrb[0].mxu0
  %587 = vdwg.mxu0
  %v588 = vadd.f32 %v541, %v582
  %v589 = vadd.f32 %v542, %v584
  %v590 = vtanh.pop %v588
  %v591 = vtanh.pop %v589
  %v592 = vxor.u32 %v588, 2147483648
  %v593 = vxor.u32 %v589, 2147483648
  %v594 = vmul.f32 %v592, 1.442695
  %v595 = vpow.pop %v594
  %v596 = vmul.f32 %v593, 1.442695
  %v597 = vpow.pop %v596
  %v598 = vadd.f32 %v595, 1.0
  %v599 = vadd.f32 %v597, 1.0
  %v600 = vrcp.pop %v598
  %v601 = vmul.f32 1.0, %v600
  %v602 = vrcp.pop %v599
  %v603 = vmul.f32 1.0, %v602
  %v604 = vsel %vm298, %v590, %v601
  %v605 = vsel %vm299, %v591, %v603
  %v606 = vmul.f32 %v604, %v534
  %608 = vrot.lane.b32.xlu0 %v605, 64
  %v609 = vpop.permute.xlu0 %608
  %v611 = vmul.f32 %v604, %v609
  %613 = vrot.lane.b32.xlu0 %v611, 64
  %v614 = vpop.permute.xlu0 %613
  %v616 = vadd.f32 %v606, %v614
  %v617 = vtanh.pop %v616
  %619 = vrot.lane.b32.xlu0 %v617, 64
  %v620 = vpop.permute.xlu0 %619
  %v622 = vmul.f32 %v605, %v620
  %v623 = vadd.f32 %v196, %v263
  %v624 = vadd.f32 %v198, %v265
  %v625 = vpack.c.bf16 %v622, %v622
  %v627 = vsel %vm379, %v625, 0
  %629 = vmatprep.subr.bf16.mxu0 %v364
  %630 = vmatpush1.bf16.msra.mxu0 %v363
  %631 = vmatprep.subr.bf16.mxu0 %v366
  %632 = vmatpush1.bf16.msra.mxu0 %v365
  %633 = vmatprep.subr.bf16.mxu0 %v368
  %634 = vmatpush1.bf16.msra.mxu0 %v367
  %635 = vmatprep.subr.bf16.mxu0 %v370
  %636 = vmatpush1.bf16.msra.mxu0 %v369
  %637 = vmatprep.subr.bf16.mxu0 0
  %638 = vmatpush1.bf16.msra.mxu0 0
  %639 = vmatprep.subr.bf16.mxu0 0
  %640 = vmatpush1.bf16.msra.mxu0 0
  %641 = vmatprep.subr.bf16.mxu0 0
  %642 = vmatpush1.bf16.msra.mxu0 0
  %643 = vmatprep.subr.bf16.mxu0 0
  %644 = vmatpush1.bf16.msra.mxu0 0
  %645 = vmatprep.subr.bf16.mxu0 0
  %646 = vmatpush1.bf16.msra.mxu0 0
  %647 = vmatprep.subr.bf16.mxu0 0
  %648 = vmatpush1.bf16.msra.mxu0 0
  %649 = vmatprep.subr.bf16.mxu0 0
  %650 = vmatpush1.bf16.msra.mxu0 0
  %651 = vmatprep.subr.bf16.mxu0 0
  %652 = vmatpush1.bf16.msra.mxu0 0
  %653 = vmatprep.subr.bf16.mxu0 0
  %654 = vmatpush1.bf16.msra.mxu0 0
  %655 = vmatprep.subr.bf16.mxu0 0
  %656 = vmatpush1.bf16.msra.mxu0 0
  %657 = vmatprep.subr.bf16.mxu0 0
  %658 = vmatpush1.bf16.msra.mxu0 0
  %659 = vmatprep.subr.bf16.mxu0 0
  %660 = vmatpush1.bf16.msra.mxu0 0
  %661 = vmatprep.mubr.bf16.mxu0 0
  %662 = vmatmul.mubr.bf16.gmra.mrb[0].mxu0 %v627
  %v663 = vpop.f32.mrb[0].mxu0
  %v664 = vadd.f32 0.0, %v663
  %v665 = vpop.f32.mrb[0].mxu0
  %v666 = vadd.f32 0.0, %v665
  %v667 = vpop.f32.mrb[0].mxu0
  %v668 = vpop.f32.mrb[0].mxu0
  %669 = vdwg.mxu0
  %v670 = vadd.f32 %v623, %v664
  %v671 = vadd.f32 %v624, %v666
  %v672 = vtanh.pop %v670
  %v673 = vtanh.pop %v671
  %v674 = vxor.u32 %v670, 2147483648
  %v675 = vxor.u32 %v671, 2147483648
  %v676 = vmul.f32 %v674, 1.442695
  %v677 = vpow.pop %v676
  %v678 = vmul.f32 %v675, 1.442695
  %v679 = vpow.pop %v678
  %v680 = vadd.f32 %v677, 1.0
  %v681 = vadd.f32 %v679, 1.0
  %v682 = vrcp.pop %v680
  %v683 = vmul.f32 1.0, %v682
  %v684 = vrcp.pop %v681
  %v685 = vmul.f32 1.0, %v684
  %v686 = vsel %vm298, %v672, %v683
  %v687 = vsel %vm299, %v673, %v685
  %v688 = vmul.f32 %v686, %v616
  %690 = vrot.lane.b32.xlu0 %v687, 64
  %v691 = vpop.permute.xlu0 %690
  %v693 = vmul.f32 %v686, %v691
  %695 = vrot.lane.b32.xlu0 %v693, 64
  %v696 = vpop.permute.xlu0 %695
  %v698 = vadd.f32 %v688, %v696
  %v699 = vtanh.pop %v698
  %701 = vrot.lane.b32.xlu0 %v699, 64
  %v702 = vpop.permute.xlu0 %701
  %v704 = vmul.f32 %v687, %v702
  %v705 = vadd.f32 %v200, %v259
  %v706 = vadd.f32 %v202, %v261
  %v707 = vpack.c.bf16 %v704, %v704
  %v709 = vsel %vm379, %v707, 0
  %711 = vmatprep.subr.bf16.mxu0 %v364
  %712 = vmatpush1.bf16.msra.mxu0 %v363
  %713 = vmatprep.subr.bf16.mxu0 %v366
  %714 = vmatpush1.bf16.msra.mxu0 %v365
  %715 = vmatprep.subr.bf16.mxu0 %v368
  %716 = vmatpush1.bf16.msra.mxu0 %v367
  %717 = vmatprep.subr.bf16.mxu0 %v370
  %718 = vmatpush1.bf16.msra.mxu0 %v369
  %719 = vmatprep.subr.bf16.mxu0 0
  %720 = vmatpush1.bf16.msra.mxu0 0
  %721 = vmatprep.subr.bf16.mxu0 0
  %722 = vmatpush1.bf16.msra.mxu0 0
  %723 = vmatprep.subr.bf16.mxu0 0
  %724 = vmatpush1.bf16.msra.mxu0 0
  %725 = vmatprep.subr.bf16.mxu0 0
  %726 = vmatpush1.bf16.msra.mxu0 0
  %727 = vmatprep.subr.bf16.mxu0 0
  %728 = vmatpush1.bf16.msra.mxu0 0
  %729 = vmatprep.subr.bf16.mxu0 0
  %730 = vmatpush1.bf16.msra.mxu0 0
  %731 = vmatprep.subr.bf16.mxu0 0
  %732 = vmatpush1.bf16.msra.mxu0 0
  %733 = vmatprep.subr.bf16.mxu0 0
  %734 = vmatpush1.bf16.msra.mxu0 0
  %735 = vmatprep.subr.bf16.mxu0 0
  %736 = vmatpush1.bf16.msra.mxu0 0
  %737 = vmatprep.subr.bf16.mxu0 0
  %738 = vmatpush1.bf16.msra.mxu0 0
  %739 = vmatprep.subr.bf16.mxu0 0
  %740 = vmatpush1.bf16.msra.mxu0 0
  %741 = vmatprep.subr.bf16.mxu0 0
  %742 = vmatpush1.bf16.msra.mxu0 0
  %743 = vmatprep.mubr.bf16.mxu0 0
  %744 = vmatmul.mubr.bf16.gmra.mrb[0].mxu0 %v709
  %v745 = vpop.f32.mrb[0].mxu0
  %v746 = vadd.f32 0.0, %v745
  %v747 = vpop.f32.mrb[0].mxu0
  %v748 = vadd.f32 0.0, %v747
  %v749 = vpop.f32.mrb[0].mxu0
  %v750 = vpop.f32.mrb[0].mxu0
  %751 = vdwg.mxu0
  %v752 = vadd.f32 %v705, %v746
  %v753 = vadd.f32 %v706, %v748
  %v754 = vtanh.pop %v752
  %v755 = vtanh.pop %v753
  %v756 = vxor.u32 %v752, 2147483648
  %v757 = vxor.u32 %v753, 2147483648
  %v758 = vmul.f32 %v756, 1.442695
  %v759 = vpow.pop %v758
  %v760 = vmul.f32 %v757, 1.442695
  %v761 = vpow.pop %v760
  %v762 = vadd.f32 %v759, 1.0
  %v763 = vadd.f32 %v761, 1.0
  %v764 = vrcp.pop %v762
  %v765 = vmul.f32 1.0, %v764
  %v766 = vrcp.pop %v763
  %v767 = vmul.f32 1.0, %v766
  %v768 = vsel %vm298, %v754, %v765
  %v769 = vsel %vm299, %v755, %v767
  %v770 = vmul.f32 %v768, %v698
  %772 = vrot.lane.b32.xlu0 %v769, 64
  %v773 = vpop.permute.xlu0 %772
  %v775 = vmul.f32 %v768, %v773
  %777 = vrot.lane.b32.xlu0 %v775, 64
  %v778 = vpop.permute.xlu0 %777
  %v780 = vadd.f32 %v770, %v778
  %v781 = vtanh.pop %v780
  %783 = vrot.lane.b32.xlu0 %v781, 64
  %v784 = vpop.permute.xlu0 %783
  %v786 = vmul.f32 %v769, %v784
  %v787 = vadd.f32 %v206, %v253
  %v788 = vadd.f32 %v208, %v255
  %v789 = vpack.c.bf16 %v786, %v786
  %v791 = vsel %vm379, %v789, 0
  %793 = vmatprep.subr.bf16.mxu0 %v364
  %794 = vmatpush1.bf16.msra.mxu0 %v363
  %795 = vmatprep.subr.bf16.mxu0 %v366
  %796 = vmatpush1.bf16.msra.mxu0 %v365
  %797 = vmatprep.subr.bf16.mxu0 %v368
  %798 = vmatpush1.bf16.msra.mxu0 %v367
  %799 = vmatprep.subr.bf16.mxu0 %v370
  %800 = vmatpush1.bf16.msra.mxu0 %v369
  %801 = vmatprep.subr.bf16.mxu0 0
  %802 = vmatpush1.bf16.msra.mxu0 0
  %803 = vmatprep.subr.bf16.mxu0 0
  %804 = vmatpush1.bf16.msra.mxu0 0
  %805 = vmatprep.subr.bf16.mxu0 0
  %806 = vmatpush1.bf16.msra.mxu0 0
  %807 = vmatprep.subr.bf16.mxu0 0
  %808 = vmatpush1.bf16.msra.mxu0 0
  %809 = vmatprep.subr.bf16.mxu0 0
  %810 = vmatpush1.bf16.msra.mxu0 0
  %811 = vmatprep.subr.bf16.mxu0 0
  %812 = vmatpush1.bf16.msra.mxu0 0
  %813 = vmatprep.subr.bf16.mxu0 0
  %814 = vmatpush1.bf16.msra.mxu0 0
  %815 = vmatprep.subr.bf16.mxu0 0
  %816 = vmatpush1.bf16.msra.mxu0 0
  %817 = vmatprep.subr.bf16.mxu0 0
  %818 = vmatpush1.bf16.msra.mxu0 0
  %819 = vmatprep.subr.bf16.mxu0 0
  %820 = vmatpush1.bf16.msra.mxu0 0
  %821 = vmatprep.subr.bf16.mxu0 0
  %822 = vmatpush1.bf16.msra.mxu0 0
  %823 = vmatprep.subr.bf16.mxu0 0
  %824 = vmatpush1.bf16.msra.mxu0 0
  %825 = vmatprep.mubr.bf16.mxu0 0
  %826 = vmatmul.mubr.bf16.gmra.mrb[0].mxu0 %v791
  %v827 = vpop.f32.mrb[0].mxu0
  %v828 = vadd.f32 0.0, %v827
  %v829 = vpop.f32.mrb[0].mxu0
  %v830 = vadd.f32 0.0, %v829
  %v831 = vpop.f32.mrb[0].mxu0
  %v832 = vpop.f32.mrb[0].mxu0
  %833 = vdwg.mxu0
  %v834 = vadd.f32 %v787, %v828
  %v835 = vadd.f32 %v788, %v830
  %v836 = vtanh.pop %v834
  %v837 = vtanh.pop %v835
  %v838 = vxor.u32 %v834, 2147483648
  %v839 = vxor.u32 %v835, 2147483648
  %v840 = vmul.f32 %v838, 1.442695
  %v841 = vpow.pop %v840
  %v842 = vmul.f32 %v839, 1.442695
  %v843 = vpow.pop %v842
  %v844 = vadd.f32 %v841, 1.0
  %v845 = vadd.f32 %v843, 1.0
  %v846 = vrcp.pop %v844
  %v847 = vmul.f32 1.0, %v846
  %v848 = vrcp.pop %v845
  %v849 = vmul.f32 1.0, %v848
  %v850 = vsel %vm298, %v836, %v847
  %v851 = vsel %vm299, %v837, %v849
  %v852 = vmul.f32 %v850, %v780
  %854 = vrot.lane.b32.xlu0 %v851, 64
  %v855 = vpop.permute.xlu0 %854
  %v857 = vmul.f32 %v850, %v855
  %859 = vrot.lane.b32.xlu0 %v857, 64
  %v860 = vpop.permute.xlu0 %859
  %v862 = vadd.f32 %v852, %v860
  %v863 = vtanh.pop %v862
  %865 = vrot.lane.b32.xlu0 %v863, 64
  %v866 = vpop.permute.xlu0 %865
  %v868 = vmul.f32 %v851, %v866
  %v869 = vadd.f32 %v210, %v249
  %v870 = vadd.f32 %v212, %v251
  %v871 = vpack.c.bf16 %v868, %v868
  %v873 = vsel %vm379, %v871, 0
  %875 = vmatprep.subr.bf16.mxu0 %v364
  %876 = vmatpush1.bf16.msra.mxu0 %v363
  %877 = vmatprep.subr.bf16.mxu0 %v366
  %878 = vmatpush1.bf16.msra.mxu0 %v365
  %879 = vmatprep.subr.bf16.mxu0 %v368
  %880 = vmatpush1.bf16.msra.mxu0 %v367
  %881 = vmatprep.subr.bf16.mxu0 %v370
  %882 = vmatpush1.bf16.msra.mxu0 %v369
  %883 = vmatprep.subr.bf16.mxu0 0
  %884 = vmatpush1.bf16.msra.mxu0 0
  %885 = vmatprep.subr.bf16.mxu0 0
  %886 = vmatpush1.bf16.msra.mxu0 0
  %887 = vmatprep.subr.bf16.mxu0 0
  %888 = vmatpush1.bf16.msra.mxu0 0
  %889 = vmatprep.subr.bf16.mxu0 0
  %890 = vmatpush1.bf16.msra.mxu0 0
  %891 = vmatprep.subr.bf16.mxu0 0
  %892 = vmatpush1.bf16.msra.mxu0 0
  %893 = vmatprep.subr.bf16.mxu0 0
  %894 = vmatpush1.bf16.msra.mxu0 0
  %895 = vmatprep.subr.bf16.mxu0 0
  %896 = vmatpush1.bf16.msra.mxu0 0
  %897 = vmatprep.subr.bf16.mxu0 0
  %898 = vmatpush1.bf16.msra.mxu0 0
  %899 = vmatprep.subr.bf16.mxu0 0
  %900 = vmatpush1.bf16.msra.mxu0 0
  %901 = vmatprep.subr.bf16.mxu0 0
  %902 = vmatpush1.bf16.msra.mxu0 0
  %903 = vmatprep.subr.bf16.mxu0 0
  %904 = vmatpush1.bf16.msra.mxu0 0
  %905 = vmatprep.subr.bf16.mxu0 0
  %906 = vmatpush1.bf16.msra.mxu0 0
  %907 = vmatprep.mubr.bf16.mxu0 0
  %908 = vmatmul.mubr.bf16.gmra.mrb[0].mxu0 %v873
  %v909 = vpop.f32.mrb[0].mxu0
  %v910 = vadd.f32 0.0, %v909
  %v911 = vpop.f32.mrb[0].mxu0
  %v912 = vadd.f32 0.0, %v911
  %v913 = vpop.f32.mrb[0].mxu0
  %v914 = vpop.f32.mrb[0].mxu0
  %915 = vdwg.mxu0
  %v916 = vadd.f32 %v869, %v910
  %v917 = vadd.f32 %v870, %v912
  %v918 = vtanh.pop %v916
  %v919 = vtanh.pop %v917
  %v920 = vxor.u32 %v916, 2147483648
  %v921 = vxor.u32 %v917, 2147483648
  %v922 = vmul.f32 %v920, 1.442695
  %v923 = vpow.pop %v922
  %v924 = vmul.f32 %v921, 1.442695
  %v925 = vpow.pop %v924
  %v926 = vadd.f32 %v923, 1.0
  %v927 = vadd.f32 %v925, 1.0
  %v928 = vrcp.pop %v926
  %v929 = vmul.f32 1.0, %v928
  %v930 = vrcp.pop %v927
  %v931 = vmul.f32 1.0, %v930
  %v932 = vsel %vm298, %v918, %v929
  %v933 = vsel %vm299, %v919, %v931
  %v934 = vmul.f32 %v932, %v862
  %936 = vrot.lane.b32.xlu0 %v933, 64
  %v937 = vpop.permute.xlu0 %936
  %v939 = vmul.f32 %v932, %v937
  %941 = vrot.lane.b32.xlu0 %v939, 64
  %v942 = vpop.permute.xlu0 %941
  %v944 = vadd.f32 %v934, %v942
  %v945 = vtanh.pop %v944
  %947 = vrot.lane.b32.xlu0 %v945, 64
  %v948 = vpop.permute.xlu0 %947
  %v950 = vmul.f32 %v933, %v948
  %v951 = vpack.c.bf16 %v458, %v335
  %v952 = vpack.c.bf16 %v622, %v540
  %v953 = vpack.c.bf16 %v786, %v704
  %v954 = vpack.c.bf16 %v950, %v868
  %v955 = vpack.c.bf16 %v868, %v950
  %v956 = vpack.c.bf16 %v704, %v786
  %v957 = vpack.c.bf16 %v540, %v622
  %v958 = vpack.c.bf16 %v335, %v458
  %v959 = vld [vmem:[%s4] sm:$0xf]
  %v960 = vld [vmem:[%s4 + $0x4] sm:$0xf]
  %v961 = vld [vmem:[%s4 + $0x8] sm:$0xf]
  %v962 = vld [vmem:[%s4 + $0xc] sm:$0xf]
  %v963 = vld [vmem:[%s5] sm:$0xf]
  %v964 = vld [vmem:[%s5 + $0x4] sm:$0xf]
  %v965 = vld [vmem:[%s5 + $0x8] sm:$0xf]
  %v966 = vld [vmem:[%s5 + $0xc] sm:$0xf]
  %971 = vrot.lane.b32.xlu0 %v955, 96
  %v972 = vpop.permute.xlu0 %971
  %973 = vrot.lane.b32.xlu0 %v956, 96
  %v974 = vpop.permute.xlu0 %973
  %975 = vrot.lane.b32.xlu0 %v957, 96
  %v976 = vpop.permute.xlu0 %975
  %977 = vrot.lane.b32.xlu0 %v958, 96
  %v978 = vpop.permute.xlu0 %977
  %v983 = vunpack.c.l.b16 %v963
  %v984 = vunpack.c.l.b16 %v964
  %v985 = vunpack.c.l.b16 %v965
  %v986 = vunpack.c.l.b16 %v966
  %v987 = vpack.c.b16 %v984, %v983
  %v988 = vpack.c.b16 %v986, %v985
  %vm991 = vcmask 261120
  %v993 = vsel %vm991, %v972, 0
  %v996 = vsel %vm991, %v974, 0
  %v999 = vsel %vm991, %v976, 0
  %v1002 = vsel %vm991, %v978, 0
  %1004 = vmatprep.subr.bf16.mxu0 0
  %1005 = vmatpush1.bf16.msra.mxu0 %v987
  %1006 = vmatprep.subr.bf16.mxu0 0
  %1007 = vmatpush1.bf16.msra.mxu0 %v988
  %1008 = vmatprep.subr.bf16.mxu0 0
  %1009 = vmatpush1.bf16.msra.mxu0 0
  %1010 = vmatprep.subr.bf16.mxu0 0
  %1011 = vmatpush1.bf16.msra.mxu0 0
  %1012 = vmatprep.subr.bf16.mxu0 0
  %1013 = vmatpush1.bf16.msra.mxu0 0
  %1014 = vmatprep.subr.bf16.mxu0 0
  %1015 = vmatpush1.bf16.msra.mxu0 0
  %1016 = vmatprep.subr.bf16.mxu0 0
  %1017 = vmatpush1.bf16.msra.mxu0 0
  %1018 = vmatprep.subr.bf16.mxu0 0
  %1019 = vmatpush1.bf16.msra.mxu0 0
  %1020 = vmatprep.subr.bf16.mxu0 0
  %1021 = vmatpush1.bf16.msra.mxu0 0
  %1022 = vmatprep.subr.bf16.mxu0 0
  %1023 = vmatpush1.bf16.msra.mxu0 0
  %1024 = vmatprep.subr.bf16.mxu0 0
  %1025 = vmatpush1.bf16.msra.mxu0 0
  %1026 = vmatprep.subr.bf16.mxu0 0
  %1027 = vmatpush1.bf16.msra.mxu0 0
  %1028 = vmatprep.subr.bf16.mxu0 0
  %1029 = vmatpush1.bf16.msra.mxu0 0
  %1030 = vmatprep.subr.bf16.mxu0 0
  %1031 = vmatpush1.bf16.msra.mxu0 0
  %1032 = vmatprep.subr.bf16.mxu0 0
  %1033 = vmatpush1.bf16.msra.mxu0 0
  %1034 = vmatprep.subr.bf16.mxu0 0
  %1035 = vmatpush1.bf16.msra.mxu0 0
  %1036 = vmatprep.mubr.bf16.mxu0 0
  %1037 = vmatmul.mubr.bf16.gmra.mrb[0].mxu0 %v993
  %v1038 = vpop.f32.mrb[0].mxu0
  %v1039 = vadd.f32 0.0, %v1038
  %v1040 = vpop.f32.mrb[0].mxu0
  %v1041 = vpop.f32.mrb[0].mxu0
  %v1042 = vadd.f32 0.0, %v1041
  %v1043 = vpop.f32.mrb[0].mxu0
  %1044 = vmatprep.mubr.bf16.mxu0 0
  %1045 = vmatmul.mubr.bf16.gmra.mrb[0].mxu0 %v996
  %v1046 = vpop.f32.mrb[0].mxu0
  %v1047 = vadd.f32 0.0, %v1046
  %v1048 = vpop.f32.mrb[0].mxu0
  %v1049 = vpop.f32.mrb[0].mxu0
  %v1050 = vadd.f32 0.0, %v1049
  %v1051 = vpop.f32.mrb[0].mxu0
  %1052 = vmatprep.mubr.bf16.mxu0 0
  %1053 = vmatmul.mubr.bf16.gmra.mrb[0].mxu0 %v999
  %v1054 = vpop.f32.mrb[0].mxu0
  %v1055 = vadd.f32 0.0, %v1054
  %v1056 = vpop.f32.mrb[0].mxu0
  %v1057 = vpop.f32.mrb[0].mxu0
  %v1058 = vadd.f32 0.0, %v1057
  %v1059 = vpop.f32.mrb[0].mxu0
  %1060 = vmatprep.mubr.bf16.mxu0 0
  %1061 = vmatmul.mubr.bf16.gmra.mrb[0].mxu0 %v1002
  %v1062 = vpop.f32.mrb[0].mxu0
  %v1063 = vadd.f32 0.0, %v1062
  %v1064 = vpop.f32.mrb[0].mxu0
  %v1065 = vpop.f32.mrb[0].mxu0
  %v1066 = vadd.f32 0.0, %v1065
  %v1067 = vpop.f32.mrb[0].mxu0
  %1068 = vdwg.mxu0
  %v1073 = vunpack.c.l.b16 %v959
  %v1074 = vunpack.c.l.b16 %v960
  %v1075 = vunpack.c.l.b16 %v961
  %v1076 = vunpack.c.l.b16 %v962
  %v1077 = vpack.c.b16 %v1074, %v1073
  %v1078 = vpack.c.b16 %v1076, %v1075
  %v1082 = vsel %vm991, %v951, 0
  %v1085 = vsel %vm991, %v952, 0
  %v1088 = vsel %vm991, %v953, 0
  %v1091 = vsel %vm991, %v954, 0
  %1093 = vmatprep.subr.bf16.mxu0 0
  %1094 = vmatpush1.bf16.msra.mxu0 %v1077
  %1095 = vmatprep.subr.bf16.mxu0 0
  %1096 = vmatpush1.bf16.msra.mxu0 %v1078
  %1097 = vmatprep.subr.bf16.mxu0 0
  %1098 = vmatpush1.bf16.msra.mxu0 0
  %1099 = vmatprep.subr.bf16.mxu0 0
  %1100 = vmatpush1.bf16.msra.mxu0 0
  %1101 = vmatprep.subr.bf16.mxu0 0
  %1102 = vmatpush1.bf16.msra.mxu0 0
  %1103 = vmatprep.subr.bf16.mxu0 0
  %1104 = vmatpush1.bf16.msra.mxu0 0
  %1105 = vmatprep.subr.bf16.mxu0 0
  %1106 = vmatpush1.bf16.msra.mxu0 0
  %1107 = vmatprep.subr.bf16.mxu0 0
  %1108 = vmatpush1.bf16.msra.mxu0 0
  %1109 = vmatprep.subr.bf16.mxu0 0
  %1110 = vmatpush1.bf16.msra.mxu0 0
  %1111 = vmatprep.subr.bf16.mxu0 0
  %1112 = vmatpush1.bf16.msra.mxu0 0
  %1113 = vmatprep.subr.bf16.mxu0 0
  %1114 = vmatpush1.bf16.msra.mxu0 0
  %1115 = vmatprep.subr.bf16.mxu0 0
  %1116 = vmatpush1.bf16.msra.mxu0 0
  %1117 = vmatprep.subr.bf16.mxu0 0
  %1118 = vmatpush1.bf16.msra.mxu0 0
  %1119 = vmatprep.subr.bf16.mxu0 0
  %1120 = vmatpush1.bf16.msra.mxu0 0
  %1121 = vmatprep.subr.bf16.mxu0 0
  %1122 = vmatpush1.bf16.msra.mxu0 0
  %1123 = vmatprep.subr.bf16.mxu0 0
  %1124 = vmatpush1.bf16.msra.mxu0 0
  %1125 = vmatprep.mubr.bf16.mxu0 0
  %1126 = vmatmul.mubr.bf16.gmra.mrb[0].mxu0 %v1082
  %v1127 = vpop.f32.mrb[0].mxu0
  %v1128 = vadd.f32 %v1039, %v1127
  %v1129 = vpop.f32.mrb[0].mxu0
  %v1130 = vpop.f32.mrb[0].mxu0
  %v1131 = vadd.f32 %v1042, %v1130
  %v1132 = vpop.f32.mrb[0].mxu0
  %1133 = vmatprep.mubr.bf16.mxu0 0
  %1134 = vmatmul.mubr.bf16.gmra.mrb[0].mxu0 %v1085
  %v1135 = vpop.f32.mrb[0].mxu0
  %v1136 = vadd.f32 %v1047, %v1135
  %v1137 = vpop.f32.mrb[0].mxu0
  %v1138 = vpop.f32.mrb[0].mxu0
  %v1139 = vadd.f32 %v1050, %v1138
  %v1140 = vpop.f32.mrb[0].mxu0
  %1141 = vmatprep.mubr.bf16.mxu0 0
  %1142 = vmatmul.mubr.bf16.gmra.mrb[0].mxu0 %v1088
  %v1143 = vpop.f32.mrb[0].mxu0
  %v1144 = vadd.f32 %v1055, %v1143
  %v1145 = vpop.f32.mrb[0].mxu0
  %v1146 = vpop.f32.mrb[0].mxu0
  %v1147 = vadd.f32 %v1058, %v1146
  %v1148 = vpop.f32.mrb[0].mxu0
  %1149 = vmatprep.mubr.bf16.mxu0 0
  %1150 = vmatmul.mubr.bf16.gmra.mrb[0].mxu0 %v1091
  %v1151 = vpop.f32.mrb[0].mxu0
  %v1152 = vadd.f32 %v1063, %v1151
  %v1153 = vpop.f32.mrb[0].mxu0
  %v1154 = vpop.f32.mrb[0].mxu0
  %v1155 = vadd.f32 %v1066, %v1154
  %v1156 = vpop.f32.mrb[0].mxu0
  %1157 = vdwg.mxu0
  %v1158 = vld [vmem:[%s6] sm:$0x1]
  %v1160 = vlaneseq
  %v1161 = vshrl.u32 %v1160, 7
  %v1162 = vsub.s32 0, %v1161
  %v1163 = vrot.slane %v1158, %v1162
  %v1165 = vadd.f32 %v1128, %v1163
  %v1166 = vadd.f32 %v1131, %v1163
  %v1167 = vadd.f32 %v1136, %v1163
  %v1168 = vadd.f32 %v1139, %v1163
  %v1169 = vadd.f32 %v1144, %v1163
  %v1170 = vadd.f32 %v1147, %v1163
  %v1171 = vadd.f32 %v1152, %v1163
  %v1172 = vadd.f32 %v1155, %v1163
  %v1173 = vtanh.pop %v1165
  %v1174 = vtanh.pop %v1166
  %v1175 = vtanh.pop %v1167
  %v1176 = vtanh.pop %v1168
  %v1177 = vtanh.pop %v1169
  %v1178 = vtanh.pop %v1170
  %v1179 = vtanh.pop %v1171
  %v1180 = vtanh.pop %v1172
  %v1181 = vpack.c.bf16 %v1174, %v1173
  %v1182 = vpack.c.bf16 %v1176, %v1175
  %v1183 = vpack.c.bf16 %v1178, %v1177
  %v1184 = vpack.c.bf16 %v1180, %v1179
  %v1185 = vld [vmem:[%s7] sm:$0xf]
  %v1186 = vld [vmem:[%s7 + $0x4] sm:$0xf]
  %v1187 = vld [vmem:[%s7 + $0x8] sm:$0xf]
  %v1188 = vld [vmem:[%s7 + $0xc] sm:$0xf]
  %v1189 = vld [vmem:[%s7 + $0x10] sm:$0xf]
  %v1190 = vld [vmem:[%s7 + $0x14] sm:$0xf]
  %v1191 = vld [vmem:[%s7 + $0x18] sm:$0xf]
  %v1192 = vld [vmem:[%s7 + $0x1c] sm:$0xf]
  %v1193 = vld [vmem:[#allocation2] sm:$0x1]
  %v1195 = vlaneseq
  %v1196 = vshrl.u32 %v1195, 7
  %v1197 = vsub.s32 0, %v1196
  %v1198 = vrot.slane %v1193, %v1197
  %v1208 = vunpack.c.l.b16 %v1185
  %v1209 = vunpack.c.l.b16 %v1186
  %v1210 = vunpack.c.l.b16 %v1187
  %v1211 = vunpack.c.l.b16 %v1188
  %v1212 = vunpack.c.l.b16 %v1189
  %v1213 = vunpack.c.l.b16 %v1190
  %v1214 = vunpack.c.l.b16 %v1191
  %v1215 = vunpack.c.l.b16 %v1192
  %v1216 = vpack.c.b16 %v1209, %v1208
  %v1217 = vpack.c.b16 %v1211, %v1210
  %v1218 = vpack.c.b16 %v1213, %v1212
  %v1219 = vpack.c.b16 %v1215, %v1214
  %v1225 = vsel %vm379, %v1181, 0
  %v1228 = vsel %vm379, %v1182, 0
  %v1231 = vsel %vm379, %v1183, 0
  %v1234 = vsel %vm379, %v1184, 0
  %1236 = vmatprep.subr.bf16.mxu0 0
  %1237 = vmatpush1.bf16.msra.mxu0 %v1216
  %1238 = vmatprep.subr.bf16.mxu0 0
  %1239 = vmatpush1.bf16.msra.mxu0 %v1217
  %1240 = vmatprep.subr.bf16.mxu0 0
  %1241 = vmatpush1.bf16.msra.mxu0 %v1218
  %1242 = vmatprep.subr.bf16.mxu0 0
  %1243 = vmatpush1.bf16.msra.mxu0 %v1219
  %1244 = vmatprep.subr.bf16.mxu0 0
  %1245 = vmatpush1.bf16.msra.mxu0 0
  %1246 = vmatprep.subr.bf16.mxu0 0
  %1247 = vmatpush1.bf16.msra.mxu0 0
  %1248 = vmatprep.subr.bf16.mxu0 0
  %1249 = vmatpush1.bf16.msra.mxu0 0
  %1250 = vmatprep.subr.bf16.mxu0 0
  %1251 = vmatpush1.bf16.msra.mxu0 0
  %1252 = vmatprep.subr.bf16.mxu0 0
  %1253 = vmatpush1.bf16.msra.mxu0 0
  %1254 = vmatprep.subr.bf16.mxu0 0
  %1255 = vmatpush1.bf16.msra.mxu0 0
  %1256 = vmatprep.subr.bf16.mxu0 0
  %1257 = vmatpush1.bf16.msra.mxu0 0
  %1258 = vmatprep.subr.bf16.mxu0 0
  %1259 = vmatpush1.bf16.msra.mxu0 0
  %1260 = vmatprep.subr.bf16.mxu0 0
  %1261 = vmatpush1.bf16.msra.mxu0 0
  %1262 = vmatprep.subr.bf16.mxu0 0
  %1263 = vmatpush1.bf16.msra.mxu0 0
  %1264 = vmatprep.subr.bf16.mxu0 0
  %1265 = vmatpush1.bf16.msra.mxu0 0
  %1266 = vmatprep.subr.bf16.mxu0 0
  %1267 = vmatpush1.bf16.msra.mxu0 0
  %1268 = vmatprep.mubr.bf16.mxu0 0
  %1269 = vmatmul.mubr.bf16.gmra.mrb[0].mxu0 %v1225
  %v1270 = vpop.f32.mrb[0].mxu0
  %v1271 = vadd.f32 %v1198, %v1270
  %v1272 = vpop.f32.mrb[0].mxu0
  %v1273 = vpop.f32.mrb[0].mxu0
  %v1274 = vadd.f32 %v1198, %v1273
  %v1275 = vpop.f32.mrb[0].mxu0
  %1276 = vmatprep.mubr.bf16.mxu0 0
  %1277 = vmatmul.mubr.bf16.gmra.mrb[0].mxu0 %v1228
  %v1278 = vpop.f32.mrb[0].mxu0
  %v1279 = vadd.f32 %v1198, %v1278
  %v1280 = vpop.f32.mrb[0].mxu0
  %v1281 = vpop.f32.mrb[0].mxu0
  %v1282 = vadd.f32 %v1198, %v1281
  %v1283 = vpop.f32.mrb[0].mxu0
  %1284 = vmatprep.mubr.bf16.mxu0 0
  %1285 = vmatmul.mubr.bf16.gmra.mrb[0].mxu0 %v1231
  %v1286 = vpop.f32.mrb[0].mxu0
  %v1287 = vadd.f32 %v1198, %v1286
  %v1288 = vpop.f32.mrb[0].mxu0
  %v1289 = vpop.f32.mrb[0].mxu0
  %v1290 = vadd.f32 %v1198, %v1289
  %v1291 = vpop.f32.mrb[0].mxu0
  %1292 = vmatprep.mubr.bf16.mxu0 0
  %1293 = vmatmul.mubr.bf16.gmra.mrb[0].mxu0 %v1234
  %v1294 = vpop.f32.mrb[0].mxu0
  %v1295 = vadd.f32 %v1198, %v1294
  %v1296 = vpop.f32.mrb[0].mxu0
  %v1297 = vpop.f32.mrb[0].mxu0
  %v1298 = vadd.f32 %v1198, %v1297
  %v1299 = vpop.f32.mrb[0].mxu0
  %1300 = vdwg.mxu0
  %vm1301 = vcmask 7168
  %v1302 = vsel %vm1301, %v1271, -inf
  %v1303 = vsel %vm1301, %v1274, -inf
  %v1304 = vsel %vm1301, %v1279, -inf
  %v1305 = vsel %vm1301, %v1282, -inf
  %v1306 = vsel %vm1301, %v1287, -inf
  %v1307 = vmax.f32 %v1302, %v1306
  %v1308 = vsel %vm1301, %v1290, -inf
  %v1309 = vmax.f32 %v1303, %v1308
  %v1310 = vsel %vm1301, %v1295, -inf
  %v1311 = vmax.f32 %v1304, %v1310
  %v1312 = vsel %vm1301, %v1298, -inf
  %v1313 = vmax.f32 %v1305, %v1312
  %v1314 = vmax.f32 %v1307, %v1309
  %v1315 = vmax.f32 %v1311, %v1313
  %v1316 = vmax.f32 %v1314, %v1315
  %v1317 = vsub.f32 %v1271, %v1316
  %v1318 = vsub.f32 %v1274, %v1316
  %v1319 = vsub.f32 %v1279, %v1316
  %v1320 = vsub.f32 %v1282, %v1316
  %v1321 = vsub.f32 %v1287, %v1316
  %v1322 = vsub.f32 %v1290, %v1316
  %v1323 = vsub.f32 %v1295, %v1316
  %v1324 = vsub.f32 %v1298, %v1316
  %v1325 = vmul.f32 %v1317, 1.442695
  %v1326 = vpow.pop %v1325
  %v1327 = vmul.f32 %v1318, 1.442695
  %v1328 = vpow.pop %v1327
  %v1329 = vmul.f32 %v1319, 1.442695
  %v1330 = vpow.pop %v1329
  %v1331 = vmul.f32 %v1320, 1.442695
  %v1332 = vpow.pop %v1331
  %v1333 = vmul.f32 %v1321, 1.442695
  %v1334 = vpow.pop %v1333
  %v1335 = vmul.f32 %v1322, 1.442695
  %v1336 = vpow.pop %v1335
  %v1337 = vmul.f32 %v1323, 1.442695
  %v1338 = vpow.pop %v1337
  %v1339 = vmul.f32 %v1324, 1.442695
  %v1340 = vpow.pop %v1339
  %v1341 = vsel %vm1301, %v1326, 0.0
  %v1342 = vsel %vm1301, %v1328, 0.0
  %v1343 = vadd.f32 %v1341, %v1342
  %v1344 = vsel %vm1301, %v1330, 0.0
  %v1345 = vadd.f32 %v1343, %v1344
  %v1346 = vsel %vm1301, %v1332, 0.0
  %v1347 = vadd.f32 %v1345, %v1346
  %v1348 = vsel %vm1301, %v1334, 0.0
  %v1349 = vadd.f32 %v1347, %v1348
  %v1350 = vsel %vm1301, %v1336, 0.0
  %v1351 = vadd.f32 %v1349, %v1350
  %v1352 = vsel %vm1301, %v1338, 0.0
  %v1353 = vadd.f32 %v1351, %v1352
  %v1354 = vsel %vm1301, %v1340, 0.0
  %v1355 = vadd.f32 %v1353, %v1354
  %v1356 = vrcp.pop %v1355
  %v1357 = vmul.f32 %v1326, %v1356
  %v1358 = vmul.f32 %v1328, %v1356
  %v1359 = vmul.f32 %v1330, %v1356
  %v1360 = vmul.f32 %v1332, %v1356
  %v1361 = vmul.f32 %v1334, %v1356
  %v1362 = vmul.f32 %v1336, %v1356
  %v1363 = vmul.f32 %v1338, %v1356
  %v1364 = vmul.f32 %v1340, %v1356
  %1373 = vset.pattern.permute.xlu0 0
  %1374 = vperm.xlu0 %1373, %v1357
  %v1375 = vpop.permute.xlu0 %1374
  %1376 = vset.pattern.permute.xlu0 0
  %1377 = vperm.xlu0 %1376, %v1358
  %v1378 = vpop.permute.xlu0 %1377
  %1379 = vset.pattern.permute.xlu0 0
  %1380 = vperm.xlu0 %1379, %v1359
  %v1381 = vpop.permute.xlu0 %1380
  %1382 = vset.pattern.permute.xlu0 0
  %1383 = vperm.xlu0 %1382, %v1360
  %v1384 = vpop.permute.xlu0 %1383
  %1385 = vset.pattern.permute.xlu0 0
  %1386 = vperm.xlu0 %1385, %v1361
  %v1387 = vpop.permute.xlu0 %1386
  %1388 = vset.pattern.permute.xlu0 0
  %1389 = vperm.xlu0 %1388, %v1362
  %v1390 = vpop.permute.xlu0 %1389
  %1391 = vset.pattern.permute.xlu0 0
  %1392 = vperm.xlu0 %1391, %v1363
  %v1393 = vpop.permute.xlu0 %1392
  %1394 = vset.pattern.permute.xlu0 0
  %1395 = vperm.xlu0 %1394, %v1364
  %v1396 = vpop.permute.xlu0 %1395
  %v1397 = vlaneseq
  %v1398 = vshrl.u32 %v1397, 7
  %v1399 = vsub.s32 %v296, %v1398
  %v1400 = vrot.slane %v1375, %v1399
  %v1401 = vlaneseq
  %v1402 = vshrl.u32 %v1401, 7
  %v1403 = vsub.s32 %v296, %v1402
  %v1404 = vrot.slane %v1378, %v1403
  %v1405 = vlaneseq
  %v1406 = vshrl.u32 %v1405, 7
  %v1407 = vsub.s32 %v296, %v1406
  %v1408 = vrot.slane %v1381, %v1407
  %v1409 = vlaneseq
  %v1410 = vshrl.u32 %v1409, 7
  %v1411 = vsub.s32 %v296, %v1410
  %v1412 = vrot.slane %v1384, %v1411
  %v1413 = vlaneseq
  %v1414 = vshrl.u32 %v1413, 7
  %v1415 = vsub.s32 %v296, %v1414
  %v1416 = vrot.slane %v1387, %v1415
  %v1417 = vlaneseq
  %v1418 = vshrl.u32 %v1417, 7
  %v1419 = vsub.s32 %v296, %v1418
  %v1420 = vrot.slane %v1390, %v1419
  %v1421 = vlaneseq
  %v1422 = vshrl.u32 %v1421, 7
  %v1423 = vsub.s32 %v296, %v1422
  %v1424 = vrot.slane %v1393, %v1423
  %v1425 = vlaneseq
  %v1426 = vshrl.u32 %v1425, 7
  %v1427 = vsub.s32 %v296, %v1426
  %v1428 = vrot.slane %v1396, %v1427
  %vm1429 = vcmask 1041409
  %v1430 = vsel %vm1429, %v1404, %v1400
  %vm1431 = vcmask 1042434
  %v1432 = vsel %vm1431, %v1408, %v1430
  %vm1433 = vcmask 1043459
  %v1434 = vsel %vm1433, %v1412, %v1432
  %vm1435 = vcmask 1044484
  %v1436 = vsel %vm1435, %v1416, %v1434
  %vm1437 = vcmask 1045509
  %v1438 = vsel %vm1437, %v1420, %v1436
  %vm1439 = vcmask 1046534
  %v1440 = vsel %vm1439, %v1424, %v1438
  %vm1441 = vcmask 1047559
  %v1442 = vsel %vm1441, %v1428, %v1440
  %vm1444 = vcmask 64512
  %1445 = vst.msk [vmem:[%s16] sm:$0xff] %vm1444, %v1442
  %v1454 = vmul.f32 %v1375, %v335
  %v1455 = vmul.f32 %v1378, %v458
  %v1456 = vmul.f32 %v1381, %v540
  %v1457 = vmul.f32 %v1384, %v622
  %v1458 = vmul.f32 %v1387, %v704
  %v1459 = vmul.f32 %v1390, %v786
  %v1460 = vmul.f32 %v1393, %v868
  %v1461 = vmul.f32 %v1396, %v950
  %v1462 = vsel %vm991, %v1454, 0.0
  %v1463 = vsel %vm991, %v1455, 0.0
  %v1464 = vadd.f32 %v1462, %v1463
  %v1465 = vsel %vm991, %v1456, 0.0
  %v1466 = vadd.f32 %v1464, %v1465
  %v1467 = vsel %vm991, %v1457, 0.0
  %v1468 = vadd.f32 %v1466, %v1467
  %v1469 = vsel %vm991, %v1458, 0.0
  %v1470 = vadd.f32 %v1468, %v1469
  %v1471 = vsel %vm991, %v1459, 0.0
  %v1472 = vadd.f32 %v1470, %v1471
  %v1473 = vsel %vm991, %v1460, 0.0
  %v1474 = vadd.f32 %v1472, %v1473
  %v1475 = vsel %vm991, %v1461, 0.0
  %v1476 = vadd.f32 %v1474, %v1475
  %v1477 = vmul.f32 %v1375, %v950
  %v1478 = vmul.f32 %v1378, %v868
  %v1479 = vmul.f32 %v1381, %v786
  %v1480 = vmul.f32 %v1384, %v704
  %v1481 = vmul.f32 %v1387, %v622
  %v1482 = vmul.f32 %v1390, %v540
  %v1483 = vmul.f32 %v1393, %v458
  %v1484 = vmul.f32 %v1396, %v335
  %vm1485 = vcmask 523520
  %v1486 = vsel %vm1485, %v1477, 0.0
  %v1487 = vsel %vm1485, %v1478, 0.0
  %v1488 = vadd.f32 %v1486, %v1487
  %v1489 = vsel %vm1485, %v1479, 0.0
  %v1490 = vadd.f32 %v1488, %v1489
  %v1491 = vsel %vm1485, %v1480, 0.0
  %v1492 = vadd.f32 %v1490, %v1491
  %v1493 = vsel %vm1485, %v1481, 0.0
  %v1494 = vadd.f32 %v1492, %v1493
  %v1495 = vsel %vm1485, %v1482, 0.0
  %v1496 = vadd.f32 %v1494, %v1495
  %v1497 = vsel %vm1485, %v1483, 0.0
  %v1498 = vadd.f32 %v1496, %v1497
  %v1499 = vsel %vm1485, %v1484, 0.0
  %v1500 = vadd.f32 %v1498, %v1499
  %v1501 = vpack.c.bf16 %v1476, %v1476
  %v1502 = vld [vmem:[%s9] sm:$0xf]
  %v1503 = vld [vmem:[%s9 + $0x4] sm:$0xf]
  %v1504 = vld [vmem:[%s9 + $0x8] sm:$0xf]
  %v1505 = vld [vmem:[%s9 + $0xc] sm:$0xf]
  %v1506 = vpack.c.bf16 %v1500, %v1500
  %v1507 = vld [vmem:[%s10] sm:$0xf]
  %v1508 = vld [vmem:[%s10 + $0x4] sm:$0xf]
  %v1509 = vld [vmem:[%s10 + $0x8] sm:$0xf]
  %v1510 = vld [vmem:[%s10 + $0xc] sm:$0xf]
  %1512 = vrot.lane.b32.xlu0 %v1506, 96
  %v1513 = vpop.permute.xlu0 %1512
  %v1518 = vunpack.c.l.b16 %v1507
  %v1519 = vunpack.c.l.b16 %v1508
  %v1520 = vunpack.c.l.b16 %v1509
  %v1521 = vunpack.c.l.b16 %v1510
  %v1522 = vpack.c.b16 %v1519, %v1518
  %v1523 = vpack.c.b16 %v1521, %v1520
  %v1527 = vsel %vm991, %v1513, 0
  %1529 = vmatprep.subr.bf16.mxu0 0
  %1530 = vmatpush1.bf16.msra.mxu0 %v1522
  %1531 = vmatprep.subr.bf16.mxu0 0
  %1532 = vmatpush1.bf16.msra.mxu0 %v1523
  %1533 = vmatprep.subr.bf16.mxu0 0
  %1534 = vmatpush1.bf16.msra.mxu0 0
  %1535 = vmatprep.subr.bf16.mxu0 0
  %1536 = vmatpush1.bf16.msra.mxu0 0
  %1537 = vmatprep.subr.bf16.mxu0 0
  %1538 = vmatpush1.bf16.msra.mxu0 0
  %1539 = vmatprep.subr.bf16.mxu0 0
  %1540 = vmatpush1.bf16.msra.mxu0 0
  %1541 = vmatprep.subr.bf16.mxu0 0
  %1542 = vmatpush1.bf16.msra.mxu0 0
  %1543 = vmatprep.subr.bf16.mxu0 0
  %1544 = vmatpush1.bf16.msra.mxu0 0
  %1545 = vmatprep.subr.bf16.mxu0 0
  %1546 = vmatpush1.bf16.msra.mxu0 0
  %1547 = vmatprep.subr.bf16.mxu0 0
  %1548 = vmatpush1.bf16.msra.mxu0 0
  %1549 = vmatprep.subr.bf16.mxu0 0
  %1550 = vmatpush1.bf16.msra.mxu0 0
  %1551 = vmatprep.subr.bf16.mxu0 0
  %1552 = vmatpush1.bf16.msra.mxu0 0
  %1553 = vmatprep.subr.bf16.mxu0 0
  %1554 = vmatpush1.bf16.msra.mxu0 0
  %1555 = vmatprep.subr.bf16.mxu0 0
  %1556 = vmatpush1.bf16.msra.mxu0 0
  %1557 = vmatprep.subr.bf16.mxu0 0
  %1558 = vmatpush1.bf16.msra.mxu0 0
  %1559 = vmatprep.subr.bf16.mxu0 0
  %1560 = vmatpush1.bf16.msra.mxu0 0
  %1561 = vmatprep.mubr.bf16.mxu0 0
  %1562 = vmatmul.mubr.bf16.gmra.mrb[0].mxu0 %v1527
  %v1563 = vpop.f32.mrb[0].mxu0
  %v1564 = vadd.f32 0.0, %v1563
  %v1565 = vpop.f32.mrb[0].mxu0
  %v1566 = vpop.f32.mrb[0].mxu0
  %v1567 = vpop.f32.mrb[0].mxu0
  %1568 = vdwg.mxu0
  %v1573 = vunpack.c.l.b16 %v1502
  %v1574 = vunpack.c.l.b16 %v1503
  %v1575 = vunpack.c.l.b16 %v1504
  %v1576 = vunpack.c.l.b16 %v1505
  %v1577 = vpack.c.b16 %v1574, %v1573
  %v1578 = vpack.c.b16 %v1576, %v1575
  %v1582 = vsel %vm991, %v1501, 0
  %1584 = vmatprep.subr.bf16.mxu0 0
  %1585 = vmatpush1.bf16.msra.mxu0 %v1577
  %1586 = vmatprep.subr.bf16.mxu0 0
  %1587 = vmatpush1.bf16.msra.mxu0 %v1578
  %1588 = vmatprep.subr.bf16.mxu0 0
  %1589 = vmatpush1.bf16.msra.mxu0 0
  %1590 = vmatprep.subr.bf16.mxu0 0
  %1591 = vmatpush1.bf16.msra.mxu0 0
  %1592 = vmatprep.subr.bf16.mxu0 0
  %1593 = vmatpush1.bf16.msra.mxu0 0
  %1594 = vmatprep.subr.bf16.mxu0 0
  %1595 = vmatpush1.bf16.msra.mxu0 0
  %1596 = vmatprep.subr.bf16.mxu0 0
  %1597 = vmatpush1.bf16.msra.mxu0 0
  %1598 = vmatprep.subr.bf16.mxu0 0
  %1599 = vmatpush1.bf16.msra.mxu0 0
  %1600 = vmatprep.subr.bf16.mxu0 0
  %1601 = vmatpush1.bf16.msra.mxu0 0
  %1602 = vmatprep.subr.bf16.mxu0 0
  %1603 = vmatpush1.bf16.msra.mxu0 0
  %1604 = vmatprep.subr.bf16.mxu0 0
  %1605 = vmatpush1.bf16.msra.mxu0 0
  %1606 = vmatprep.subr.bf16.mxu0 0
  %1607 = vmatpush1.bf16.msra.mxu0 0
  %1608 = vmatprep.subr.bf16.mxu0 0
  %1609 = vmatpush1.bf16.msra.mxu0 0
  %1610 = vmatprep.subr.bf16.mxu0 0
  %1611 = vmatpush1.bf16.msra.mxu0 0
  %1612 = vmatprep.subr.bf16.mxu0 0
  %1613 = vmatpush1.bf16.msra.mxu0 0
  %1614 = vmatprep.subr.bf16.mxu0 0
  %1615 = vmatpush1.bf16.msra.mxu0 0
  %1616 = vmatprep.mubr.bf16.mxu0 0
  %1617 = vmatmul.mubr.bf16.gmra.mrb[0].mxu0 %v1582
  %v1618 = vpop.f32.mrb[0].mxu0
  %v1619 = vadd.f32 %v1564, %v1618
  %v1620 = vpop.f32.mrb[0].mxu0
  %v1621 = vpop.f32.mrb[0].mxu0
  %v1622 = vpop.f32.mrb[0].mxu0
  %1623 = vdwg.mxu0
  %v1624 = vld [vmem:[%s11] sm:$0x1]
  %v1626 = vlaneseq
  %v1627 = vshrl.u32 %v1626, 7
  %v1628 = vsub.s32 0, %v1627
  %v1629 = vrot.slane %v1624, %v1628
  %v1631 = vadd.f32 %v1619, %v1629
  %v1632 = vld [vmem:[%s13] sm:$0xf]
  %v1633 = vld [vmem:[%s13 + $0x4] sm:$0xf]
  %v1634 = vld [vmem:[%s13 + $0x8] sm:$0xf]
  %v1635 = vld [vmem:[%s13 + $0xc] sm:$0xf]
  %v1636 = vld [vmem:[%s14] sm:$0x1]
  %v1637 = vtanh.pop %v1631
  %v1638 = vxor.u32 %v1631, 2147483648
  %v1639 = vmul.f32 %v1638, 1.442695
  %v1640 = vpow.pop %v1639
  %v1641 = vadd.f32 %v1640, 1.0
  %v1642 = vrcp.pop %v1641
  %v1643 = vmul.f32 1.0, %v1642
  %v1644 = vsel %vm300, %v1637, %v1643
  %v1645 = vmul.f32 %v1644, 0.0
  %1647 = vrot.lane.b32.xlu0 %v1644, 32
  %v1648 = vpop.permute.xlu0 %1647
  %v1650 = vmul.f32 %v1644, %v1648
  %1652 = vrot.lane.b32.xlu0 %v1650, 32
  %v1653 = vpop.permute.xlu0 %1652
  %v1655 = vadd.f32 %v1645, %v1653
  %v1656 = vtanh.pop %v1655
  %1658 = vrot.lane.b32.xlu0 %v1656, 32
  %v1659 = vpop.permute.xlu0 %1658
  %v1661 = vmul.f32 %v1644, %v1659
  %v1662 = vpack.c.bf16 %v1661, %v1661
  %v1664 = vlaneseq
  %v1665 = vshrl.u32 %v1664, 7
  %v1666 = vsub.s32 0, %v1665
  %v1667 = vrot.slane %v1636, %v1666
  %1670 = vrot.lane.b32.xlu0 %v1662, 64
  %v1671 = vpop.permute.xlu0 %1670
  %v1676 = vunpack.c.l.b16 %v1632
  %v1677 = vunpack.c.l.b16 %v1633
  %v1678 = vunpack.c.l.b16 %v1634
  %v1679 = vunpack.c.l.b16 %v1635
  %v1680 = vpack.c.b16 %v1677, %v1676
  %v1681 = vpack.c.b16 %v1679, %v1678
  %v1685 = vsel %vm991, %v1671, 0
  %1687 = vmatprep.subr.bf16.mxu0 0
  %1688 = vmatpush1.bf16.msra.mxu0 %v1680
  %1689 = vmatprep.subr.bf16.mxu0 0
  %1690 = vmatpush1.bf16.msra.mxu0 %v1681
  %1691 = vmatprep.subr.bf16.mxu0 0
  %1692 = vmatpush1.bf16.msra.mxu0 0
  %1693 = vmatprep.subr.bf16.mxu0 0
  %1694 = vmatpush1.bf16.msra.mxu0 0
  %1695 = vmatprep.subr.bf16.mxu0 0
  %1696 = vmatpush1.bf16.msra.mxu0 0
  %1697 = vmatprep.subr.bf16.mxu0 0
  %1698 = vmatpush1.bf16.msra.mxu0 0
  %1699 = vmatprep.subr.bf16.mxu0 0
  %1700 = vmatpush1.bf16.msra.mxu0 0
  %1701 = vmatprep.subr.bf16.mxu0 0
  %1702 = vmatpush1.bf16.msra.mxu0 0
  %1703 = vmatprep.subr.bf16.mxu0 0
  %1704 = vmatpush1.bf16.msra.mxu0 0
  %1705 = vmatprep.subr.bf16.mxu0 0
  %1706 = vmatpush1.bf16.msra.mxu0 0
  %1707 = vmatprep.subr.bf16.mxu0 0
  %1708 = vmatpush1.bf16.msra.mxu0 0
  %1709 = vmatprep.subr.bf16.mxu0 0
  %1710 = vmatpush1.bf16.msra.mxu0 0
  %1711 = vmatprep.subr.bf16.mxu0 0
  %1712 = vmatpush1.bf16.msra.mxu0 0
  %1713 = vmatprep.subr.bf16.mxu0 0
  %1714 = vmatpush1.bf16.msra.mxu0 0
  %1715 = vmatprep.subr.bf16.mxu0 0
  %1716 = vmatpush1.bf16.msra.mxu0 0
  %1717 = vmatprep.subr.bf16.mxu0 0
  %1718 = vmatpush1.bf16.msra.mxu0 0
  %1719 = vmatprep.mubr.bf16.mxu0 0
  %1720 = vmatmul.mubr.bf16.gmra.mrb[0].mxu0 %v1685
  %v1721 = vpop.f32.mrb[0].mxu0
  %v1722 = vadd.f32 %v1667, %v1721
  %v1723 = vpop.f32.mrb[0].mxu0
  %v1724 = vpop.f32.mrb[0].mxu0
  %v1725 = vpop.f32.mrb[0].mxu0
  %1726 = vdwg.mxu0
  %v1728 = vcombine.high %v1722, %v1722
  %v1730 = vunpack.c.l.s4 1966171168
  %v1731 = vunpack.c.0.s8 %v1730
  %v1732 = vlaneseq
  %v1733 = vshrl.u32 %v1732, 7
  %v1734 = vsub.s32 %v1731, %v1733
  %v1735 = vrot.slane %v1722, %v1734
  %v1737 = vunpack.c.l.s4 1966171168
  %v1738 = vunpack.c.0.s8 %v1737
  %v1739 = vlaneseq
  %v1740 = vshrl.u32 %v1739, 7
  %v1741 = vsub.s32 %v1738, %v1740
  %v1742 = vrot.slane %v1728, %v1741
  %v1743 = vcombine.high %v1735, %v1735
  %v1744 = vcombine.high %v1742, %v1742
  %v1746 = vunpack.c.l.s4 1966171168
  %v1747 = vunpack.c.0.s8 %v1746
  %v1748 = vlaneseq
  %v1749 = vshrl.u32 %v1748, 7
  %v1750 = vsub.s32 %v1747, %v1749
  %v1751 = vrot.slane %v1735, %v1750
  %v1753 = vunpack.c.l.s4 1966171168
  %v1754 = vunpack.c.0.s8 %v1753
  %v1755 = vlaneseq
  %v1756 = vshrl.u32 %v1755, 7
  %v1757 = vsub.s32 %v1754, %v1756
  %v1758 = vrot.slane %v1742, %v1757
  %v1760 = vunpack.c.l.s4 1966171168
  %v1761 = vunpack.c.0.s8 %v1760
  %v1762 = vlaneseq
  %v1763 = vshrl.u32 %v1762, 7
  %v1764 = vsub.s32 %v1761, %v1763
  %v1765 = vrot.slane %v1743, %v1764
  %v1767 = vunpack.c.l.s4 1966171168
  %v1768 = vunpack.c.0.s8 %v1767
  %v1769 = vlaneseq
  %v1770 = vshrl.u32 %v1769, 7
  %v1771 = vsub.s32 %v1768, %v1770
  %v1772 = vrot.slane %v1744, %v1771
  %v1773 = vcombine.high %v1751, %v1751
  %v1774 = vcombine.high %v1758, %v1758
  %v1775 = vcombine.high %v1765, %v1765
  %v1776 = vcombine.high %v1772, %v1772
  %vm1785 = vcmask 8192
  %1786 = vst.msk [vmem:[%s15] sm:$0x1] %vm1785, %v1751
  %1787 = vst.msk [vmem:[%s15 + $0x1] sm:$0x1] %vm1785, %v1765
  %1788 = vst.msk [vmem:[%s15 + $0x2] sm:$0x1] %vm1785, %v1773
  %1789 = vst.msk [vmem:[%s15 + $0x3] sm:$0x1] %vm1785, %v1775
  %1790 = vst.msk [vmem:[%s15 + $0x4] sm:$0x1] %vm1785, %v1758
  %1791 = vst.msk [vmem:[%s15 + $0x5] sm:$0x1] %vm1785, %v1772
  %1792 = vst.msk [vmem:[%s15 + $0x6] sm:$0x1] %vm1785, %v1774
  %1793 = vst.msk [vmem:[%s15 + $0x7] sm:$0x1] %vm1785, %v1776
  // Predicated region
  $region62: #{_lambda_.1} parent=0 // pred_check
    _
  $region63: #{_lambda_.1} parent=0 // pred_check_branch
    %1795 = sbr.rel (0) target = $region65
  $region64: #{_lambda_.1} parent=0 // pred_region
    _
  $region65: #{_lambda_.1} parent=0 // pred_fallthru
    _
  // Predicated region
  $region66: #{_lambda_.1} parent=0 // pred_check
    _
  $region67: #{_lambda_.1} parent=0 // pred_check_branch
    %1797 = sbr.rel (0) target = $region69
  $region68: #{_lambda_.1} parent=0 // pred_region
    _
  $region69: #{_lambda_.1} parent=0 // pred_fallthru
    _
  // Predicated region
  $region70: #{_lambda_.1} parent=0 // pred_check
    _
  $region71: #{_lambda_.1} parent=0 // pred_check_branch
    %1799 = sbr.rel (0) target = $region73
  $region72: #{_lambda_.1} parent=0 // pred_region
    _
  $region73: #{_lambda_.1} parent=0 // pred_fallthru
    _
  // Predicated region
  $region74: #{_lambda_.1} parent=0 // pred_check
    _
  $region75: #{_lambda_.1} parent=0 // pred_check_branch
    %1801 = sbr.rel (0) target = $region77
  $region76: #{_lambda_.1} parent=0 // pred_region
    _
  $region77: #{_lambda_.1} parent=0 // pred_fallthru
    _

</llo_original>
